<compile_context>
chip_gen: v5e
topology: v5e:2x2
jax: 0.10.0
libtpu: 0.0.40
codegen_flags: <defaults>
</compile_context>

<pallas_src>
import math
from functools import partial

import jax
import jax.numpy as jnp
from jax.experimental import pallas as pl
from jax.experimental.pallas import tpu as pltpu

# ------------------------- small synthetic BERT config -------------------------
VOCAB = 128
HIDDEN = 32              # config.hidden_size
N_LAYERS = 2
N_HEADS = 2
DH = HIDDEN // N_HEADS
FFN = 64
MAX_POS = 16
N_SENT_CLASSES = 5
LN_EPS = 1e-12
REG_INPUT = 2 * HIDDEN   # B == True -> regression_input_size = 2 * hidden_size
HEAD_PAD = 128           # task-head outputs padded to a full 128-lane width

_VMEM = pl.BlockSpec(memory_space=pltpu.MemorySpace.VMEM)

# TODO(synk): SMART adversarial-loss variants (predict_*_smart) need autodiff +
# perturbation loops and are out of scope for a forward-pass kernel.
# TODO(synk): on v7x, a leading batch grid axis with
# dimension_semantics=("parallel",) would shard the fused stack across both
# TensorCores; omitted here (B=2, grid-less single invocation keeps everything
# VMEM-resident and the launch count minimal).


# ----------------------------------- kernels -----------------------------------
def _ln(x, g, b):
    """float32 LayerNorm over the last (hidden) axis."""
    mu = jnp.mean(x, axis=-1, keepdims=True)
    var = jnp.mean(jnp.square(x - mu), axis=-1, keepdims=True)
    return (x - mu) * jax.lax.rsqrt(var + LN_EPS) * g + b


def _bert_stack_body(emb_ref, bias_ref, eg_ref, eb_ref,
                     wq_ref, bq_ref, wk_ref, bk_ref, wv_ref, bv_ref,
                     wo_ref, bo_ref, l1g_ref, l1b_ref,
                     w1_ref, b1_ref, w2_ref, b2_ref, l2g_ref, l2b_ref,
                     pw_ref, pb_ref):
    """Embedding LN -> N_LAYERS encoder layers -> CLS -> pooler tanh.
    VPU math in float32; MXU matmuls take bf16 operands with f32 accumulation."""
    x = emb_ref[...].astype(jnp.float32)                       # (N, S, H)
    N, S, H = x.shape
    x = _ln(x, eg_ref[...], eb_ref[...])                       # embedding LayerNorm
    bias = bias_ref[...]                                       # (N, 1, S) additive mask
    x2 = x.reshape(N * S, H)
    scale = 1.0 / math.sqrt(DH)

    for l in range(N_LAYERS):                                  # unrolled (2 layers)
        xb = x2.astype(jnp.bfloat16)
        attn = jnp.zeros((N * S, H), jnp.float32)
        for h in range(N_HEADS):                               # static per-head weights,
            qh = jnp.dot(xb, wq_ref[l, h],                     # no lane-dim slicing
                         preferred_element_type=jnp.float32) + bq_ref[l, h]
            kh = jnp.dot(xb, wk_ref[l, h],
                         preferred_element_type=jnp.float32) + bk_ref[l, h]
            vh = jnp.dot(xb, wv_ref[l, h],
                         preferred_element_type=jnp.float32) + bv_ref[l, h]
            qh = qh.reshape(N, S, DH)
            kh = kh.reshape(N, S, DH)
            vh = vh.reshape(N, S, DH)

            s = jnp.einsum('bqd,bkd->bqk',
                           qh.astype(jnp.bfloat16), kh.astype(jnp.bfloat16),
                           preferred_element_type=jnp.float32) * scale + bias
            m = jnp.max(s, axis=-1, keepdims=True)
            e = jnp.exp(s - m)
            p = e * pl.reciprocal(jnp.sum(e, axis=-1, keepdims=True), approx=True)
            ctx = jnp.einsum('bqk,bkd->bqd',
                             p.astype(jnp.bfloat16), vh.astype(jnp.bfloat16),
                             preferred_element_type=jnp.float32)       # (N, S, dh)
            attn = attn + jnp.dot(ctx.reshape(N * S, DH).astype(jnp.bfloat16),
                                  wo_ref[l, h],
                                  preferred_element_type=jnp.float32)
        attn = attn + bo_ref[l]

        h1 = _ln(x2 + attn, l1g_ref[l], l1b_ref[l])            # residual + LN1

        ff = jnp.dot(h1.astype(jnp.bfloat16), w1_ref[l],
                     preferred_element_type=jnp.float32) + b1_ref[l]
        # TODO(synk): PyTorch BERT uses the exact erf GELU; the tanh approximation
        # differs at the ~1e-3 level but lowers cleanly on the EUP.
        ff = jax.nn.gelu(ff, approximate=True)
        ff = jnp.dot(ff.astype(jnp.bfloat16), w2_ref[l],
                     preferred_element_type=jnp.float32) + b2_ref[l]

        x2 = _ln(h1 + ff, l2g_ref[l], l2b_ref[l])              # residual + LN2

    cls = x2.reshape(N, S, H)[:, 0:1, :].reshape(N, H)         # [CLS] hidden state
    pooled = jnp.tanh(jnp.dot(cls.astype(jnp.bfloat16), pw_ref[...],
                              preferred_element_type=jnp.float32) + pb_ref[...])
    return pooled


def bert_stack_kernel(*refs):
    """== MultitaskBERT.forward (pooler_output only), fully fused."""
    *body_refs, pooled_ref = refs
    pooled_ref[...] = _bert_stack_body(*body_refs).astype(pooled_ref.dtype)


def bert_stack_head_kernel(*refs, pair, relu, with_pooled):
    """BERT stack + fused task head (head output padded to HEAD_PAD lanes).
    Dropout layers are identity in eval mode (no RNG / training path here)."""
    if with_pooled:
        *body_refs, hw_ref, hb_ref, pooled_ref, head_ref = refs
    else:
        *body_refs, hw_ref, hb_ref, head_ref = refs
        pooled_ref = None
    pooled = _bert_stack_body(*body_refs)
    if with_pooled:
        pooled_ref[...] = pooled.astype(pooled_ref.dtype)
    if pair:
        # rows are [seq1 batch ; seq2 batch];  head(concat(p1, p2)) is computed
        # as p1 @ W[:H] + p2 @ W[H:]  (avoids an in-kernel feature concat).
        n = pooled.shape[0] // 2
        p3 = pooled.reshape(2, n, HIDDEN)
        y = (jnp.dot(p3[0].astype(jnp.bfloat16), hw_ref[pl.ds(0, HIDDEN), :],
                     preferred_element_type=jnp.float32)
             + jnp.dot(p3[1].astype(jnp.bfloat16), hw_ref[pl.ds(HIDDEN, HIDDEN), :],
                       preferred_element_type=jnp.float32)
             + hb_ref[...])
    else:
        y = jnp.dot(pooled.astype(jnp.bfloat16), hw_ref[...],
                    preferred_element_type=jnp.float32) + hb_ref[...]
    if relu:
        y = jnp.maximum(y, 0.0)
    head_ref[...] = y.astype(head_ref.dtype)


# --------------------------------- parameters ----------------------------------
def init_params(key):
    def normal(k, shape):
        return 0.02 * jax.random.normal(k, shape, jnp.float32)

    keys = iter(jax.random.split(key, 64))

    layers = []
    for _ in range(N_LAYERS):
        layers.append({
            'wq': normal(next(keys), (HIDDEN, HIDDEN)), 'bq': jnp.zeros((HIDDEN,), jnp.float32),
            'wk': normal(next(keys), (HIDDEN, HIDDEN)), 'bk': jnp.zeros((HIDDEN,), jnp.float32),
            'wv': normal(next(keys), (HIDDEN, HIDDEN)), 'bv': jnp.zeros((HIDDEN,), jnp.float32),
            'wo': normal(next(keys), (HIDDEN, HIDDEN)), 'bo': jnp.zeros((HIDDEN,), jnp.float32),
            'ln1_g': jnp.ones((HIDDEN,), jnp.float32), 'ln1_b': jnp.zeros((HIDDEN,), jnp.float32),
            'w1': normal(next(keys), (HIDDEN, FFN)),    'b1': jnp.zeros((FFN,), jnp.float32),
            'w2': normal(next(keys), (FFN, HIDDEN)),    'b2': jnp.zeros((HIDDEN,), jnp.float32),
            'ln2_g': jnp.ones((HIDDEN,), jnp.float32), 'ln2_b': jnp.zeros((HIDDEN,), jnp.float32),
        })

    sentiment_w = normal(next(keys), (HIDDEN, N_SENT_CLASSES))
    paraphrase_w = normal(next(keys), (REG_INPUT, 1))
    similarity_w = normal(next(keys), (REG_INPUT, 1))

    def split_cols(w):            # (H_in, H_out) -> (NH, H_in, dh): per-head columns
        return jnp.transpose(w.reshape(HIDDEN, N_HEADS, DH), (1, 0, 2))

    def stack(fn):
        return jnp.stack([fn(lp) for lp in layers])

    bf16 = jnp.bfloat16
    stacked = {
        'emb_ln_g': jnp.ones((1, HIDDEN), jnp.float32),
        'emb_ln_b': jnp.zeros((1, HIDDEN), jnp.float32),
        # attention weights pre-split per head -> no lane slicing in-kernel
        'wq': stack(lambda l: split_cols(l['wq'])).astype(bf16),          # (L, NH, H, dh)
        'bq': stack(lambda l: l['bq'].reshape(N_HEADS, 1, DH)),           # (L, NH, 1, dh)
        'wk': stack(lambda l: split_cols(l['wk'])).astype(bf16),
        'bk': stack(lambda l: l['bk'].reshape(N_HEADS, 1, DH)),
        'wv': stack(lambda l: split_cols(l['wv'])).astype(bf16),
        'bv': stack(lambda l: l['bv'].reshape(N_HEADS, 1, DH)),
        'wo': stack(lambda l: l['wo'].reshape(N_HEADS, DH, HIDDEN)).astype(bf16),  # (L,NH,dh,H)
        'bo': stack(lambda l: l['bo'].reshape(1, HIDDEN)),
        'ln1_g': stack(lambda l: l['ln1_g'].reshape(1, HIDDEN)),
        'ln1_b': stack(lambda l: l['ln1_b'].reshape(1, HIDDEN)),
        'w1': stack(lambda l: l['w1']).astype(bf16),                      # (L, H, FFN)
        'b1': stack(lambda l: l['b1'].reshape(1, FFN)),
        'w2': stack(lambda l: l['w2']).astype(bf16),                      # (L, FFN, H)
        'b2': stack(lambda l: l['b2'].reshape(1, HIDDEN)),
        'ln2_g': stack(lambda l: l['ln2_g'].reshape(1, HIDDEN)),
        'ln2_b': stack(lambda l: l['ln2_b'].reshape(1, HIDDEN)),
        'pooler_w': normal(next(keys), (HIDDEN, HIDDEN)).astype(bf16),
        'pooler_b': jnp.zeros((1, HIDDEN), jnp.float32),
        # task heads zero-padded to HEAD_PAD output lanes (unmasked stores)
        'sentiment_w': jnp.zeros((HIDDEN, HEAD_PAD), jnp.float32)
                          .at[:, :N_SENT_CLASSES].set(sentiment_w).astype(bf16),
        'sentiment_b': jnp.zeros((1, HEAD_PAD), jnp.float32),
        # column 0: paraphrase head, column 1: similarity head (both ReLU'd)
        'pair_w': jnp.zeros((REG_INPUT, HEAD_PAD), jnp.float32)
                     .at[:, 0:1].set(paraphrase_w)
                     .at[:, 1:2].set(similarity_w).astype(bf16),
        'pair_b': jnp.zeros((1, HEAD_PAD), jnp.float32),
    }

    return {
        'word_emb': normal(next(keys), (VOCAB, HIDDEN)),
        'pos_emb': normal(next(keys), (MAX_POS, HIDDEN)),
        'tok_emb': normal(next(keys), (2, HIDDEN)),
        'stacked': stacked,
    }


# ----------------------------- model wrappers (glue) -----------------------------
def _embed_and_bias(params, input_ids, attention_mask):
    # Embedding gather stays in plain JAX glue; everything downstream is fused
    # into one Pallas kernel (including the embedding LayerNorm).
    S = input_ids.shape[1]
    we = jnp.take(params['word_emb'], input_ids, axis=0)              # (N, S, H)
    pe = params['pos_emb'][:S][None, :, :]
    # reference calls self.bert(input_ids, attention_mask) without
    # token_type_ids -> all tokens get type-0 embedding
    te = params['tok_emb'][0][None, None, :]
    emb = we + pe + te
    bias = ((1.0 - attention_mask.astype(jnp.float32)) * -10000.0)[:, None, :]
    return emb, bias


def _stack_args(sp, emb, bias):
    return [emb, bias, sp['emb_ln_g'], sp['emb_ln_b'],
            sp['wq'], sp['bq'], sp['wk'], sp['bk'], sp['wv'], sp['bv'],
            sp['wo'], sp['bo'], sp['ln1_g'], sp['ln1_b'],
            sp['w1'], sp['b1'], sp['w2'], sp['b2'], sp['ln2_g'], sp['ln2_b'],
            sp['pooler_w'], sp['pooler_b']]


@jax.jit
def bert_forward(params, input_ids, attention_mask):
    """== MultitaskBERT.forward: BERT pooler_output via one fused kernel."""
    emb, bias = _embed_and_bias(params, input_ids, attention_mask)
    args = _stack_args(params['stacked'], emb, bias)
    return pl.pallas_call(
        bert_stack_kernel,
        out_shape=jax.ShapeDtypeStruct((emb.shape[0], HIDDEN), jnp.float32),
        in_specs=[_VMEM] * len(args),
        out_specs=_VMEM,
    )(*args)


def _forward_with_head(params, emb, bias, hw, hb, *, pair, relu,
                       n_head_rows, with_pooled):
    args = _stack_args(params['stacked'], emb, bias) + [hw, hb]
    kern = partial(bert_stack_head_kernel, pair=pair, relu=relu,
                   with_pooled=with_pooled)
    if with_pooled:
        out_shape = (jax.ShapeDtypeStruct((emb.shape[0], HIDDEN), jnp.float32),
                     jax.ShapeDtypeStruct((n_head_rows, HEAD_PAD), jnp.float32))
        out_specs = (_VMEM, _VMEM)
    else:
        out_shape = jax.ShapeDtypeStruct((n_head_rows, HEAD_PAD), jnp.float32)
        out_specs = _VMEM
    return pl.pallas_call(
        kern, out_shape=out_shape,
        in_specs=[_VMEM] * len(args),
        out_specs=out_specs,
    )(*args)


@jax.jit
def _sentiment_with_pooled(params, input_ids, attention_mask):
    """One fused kernel call -> (pooler_output, sentiment logits)."""
    sp = params['stacked']
    emb, bias = _embed_and_bias(params, input_ids, attention_mask)
    pooled, head = _forward_with_head(params, emb, bias,
                                      sp['sentiment_w'], sp['sentiment_b'],
                                      pair=False, relu=False,
                                      n_head_rows=emb.shape[0], with_pooled=True)
    return pooled, head[:, :N_SENT_CLASSES]


def predict_sentiment(params, input_ids, attention_mask):
    return _sentiment_with_pooled(params, input_ids, attention_mask)[1]


@jax.jit
def _pair_logits(params, ids_comb, mask_comb, ids_comb2, mask_comb2):
    """One fused forward over [seq1 batch ; seq2 batch]; both pair heads are
    computed in the same padded matmul -> (paraphrase_logit, similarity_logit)."""
    sp = params['stacked']
    ids = jnp.concatenate([ids_comb, ids_comb2], axis=0)
    mask = jnp.concatenate([mask_comb, mask_comb2], axis=0)
    emb, bias = _embed_and_bias(params, ids, mask)
    n_pairs = ids_comb.shape[0]
    head = _forward_with_head(params, emb, bias, sp['pair_w'], sp['pair_b'],
                              pair=True, relu=True,
                              n_head_rows=n_pairs, with_pooled=False)
    return head[:, 0:1], head[:, 1:2]


def predict_paraphrase(params, ids_comb, mask_comb, ids_comb2, mask_comb2):
    return _pair_logits(params, ids_comb, mask_comb, ids_comb2, mask_comb2)[0]


def predict_similarity(params, ids_comb, mask_comb, ids_comb2, mask_comb2):
    return _pair_logits(params, ids_comb, mask_comb, ids_comb2, mask_comb2)[1]


# ------------------------------------- main -------------------------------------
if __name__ == "__main__":
    key = jax.random.PRNGKey(0)
    pkey, dkey = jax.random.split(key)
    params = init_params(pkey)

    BATCH, SEQ = 2, 8
    k1, k2 = jax.random.split(dkey)
    input_ids = jax.random.randint(k1, (BATCH, SEQ), 0, VOCAB, dtype=jnp.int32)
    attention_mask = jnp.ones((BATCH, SEQ), jnp.int32).at[0, 6:].set(0)
    input_ids2 = jax.random.randint(k2, (BATCH, SEQ), 0, VOCAB, dtype=jnp.int32)
    attention_mask2 = jnp.ones((BATCH, SEQ), jnp.int32)

    # fused call #1: BERT stack + sentiment head; the pooled output (== forward())
    # is reused instead of running a second full forward over the same input.
    pooled, sent_logits = _sentiment_with_pooled(params, input_ids, attention_mask)

    # fused call #2: one forward over the batch-concatenated pair sequences,
    # producing both the paraphrase and similarity logits at once.
    para_logit, sim_logit = _pair_logits(params, input_ids, attention_mask,
                                         input_ids2, attention_mask2)

    jax.block_until_ready((pooled, sent_logits, para_logit, sim_logit))

    assert pooled.shape == (BATCH, HIDDEN)
    assert sent_logits.shape == (BATCH, N_SENT_CLASSES)
    assert para_logit.shape == (BATCH, 1)
    assert sim_logit.shape == (BATCH, 1)
    assert bool(jnp.all(jnp.isfinite(pooled))) and bool(jnp.all(jnp.isfinite(sent_logits)))
    assert bool(jnp.all(para_logit >= 0)) and bool(jnp.all(sim_logit >= 0))   # ReLU heads

    print("KERNEL_OK")
</pallas_src>

<mosaic_0001>
module attributes {stable_mosaic.version = 11 : i64} {
  func.func @bert_stack_head_kernel(%arg0: memref<2x8x32xf32, #tpu.memory_space<vmem>>, %arg1: memref<2x1x8xf32, #tpu.memory_space<vmem>>, %arg2: memref<1x32xf32, #tpu.memory_space<vmem>>, %arg3: memref<1x32xf32, #tpu.memory_space<vmem>>, %arg4: memref<2x2x32x16xbf16, #tpu.memory_space<vmem>>, %arg5: memref<2x2x1x16xf32, #tpu.memory_space<vmem>>, %arg6: memref<2x2x32x16xbf16, #tpu.memory_space<vmem>>, %arg7: memref<2x2x1x16xf32, #tpu.memory_space<vmem>>, %arg8: memref<2x2x32x16xbf16, #tpu.memory_space<vmem>>, %arg9: memref<2x2x1x16xf32, #tpu.memory_space<vmem>>, %arg10: memref<2x2x16x32xbf16, #tpu.memory_space<vmem>>, %arg11: memref<2x1x32xf32, #tpu.memory_space<vmem>>, %arg12: memref<2x1x32xf32, #tpu.memory_space<vmem>>, %arg13: memref<2x1x32xf32, #tpu.memory_space<vmem>>, %arg14: memref<2x32x64xbf16, #tpu.memory_space<vmem>>, %arg15: memref<2x1x64xf32, #tpu.memory_space<vmem>>, %arg16: memref<2x64x32xbf16, #tpu.memory_space<vmem>>, %arg17: memref<2x1x32xf32, #tpu.memory_space<vmem>>, %arg18: memref<2x1x32xf32, #tpu.memory_space<vmem>>, %arg19: memref<2x1x32xf32, #tpu.memory_space<vmem>>, %arg20: memref<32x32xbf16, #tpu.memory_space<vmem>>, %arg21: memref<1x32xf32, #tpu.memory_space<vmem>>, %arg22: memref<32x128xbf16, #tpu.memory_space<vmem>>, %arg23: memref<1x128xf32, #tpu.memory_space<vmem>>, %arg24: memref<2x32xf32, #tpu.memory_space<vmem>>, %arg25: memref<2x128xf32, #tpu.memory_space<vmem>>) attributes {dimension_semantics = [], scalar_prefetch = 0 : i64, scratch_operands = 0 : i64, tpu.core_type = #tpu.core_type<tc>} {
    %c0 = arith.constant 0 : index
    %c0_0 = arith.constant 0 : index
    %c0_1 = arith.constant 0 : index
    %0 = vector.load %arg0[%c0, %c0_0, %c0_1] : memref<2x8x32xf32, #tpu.memory_space<vmem>>, vector<2x8x32xf32>
    %c0_2 = arith.constant 0 : index
    %c0_3 = arith.constant 0 : index
    %1 = vector.load %arg2[%c0_2, %c0_3] : memref<1x32xf32, #tpu.memory_space<vmem>>, vector<1x32xf32>
    %c0_4 = arith.constant 0 : index
    %c0_5 = arith.constant 0 : index
    %2 = vector.load %arg3[%c0_4, %c0_5] : memref<1x32xf32, #tpu.memory_space<vmem>>, vector<1x32xf32>
    %cst = arith.constant dense<0.000000e+00> : vector<2x8xf32>
    %3 = vector.multi_reduction <add>, %0, %cst [2] : vector<2x8x32xf32> to vector<2x8xf32>
    %4 = vector.shape_cast %3 : vector<2x8xf32> to vector<2x8x1xf32>
    %cst_6 = arith.constant 3.200000e+01 : f32
    %5 = vector.broadcast %cst_6 : f32 to vector<2x8x1xf32>
    %6 = arith.divf %4, %5 : vector<2x8x1xf32>
    %7 = vector.broadcast %6 : vector<2x8x1xf32> to vector<2x8x32xf32>
    %8 = arith.subf %0, %7 : vector<2x8x32xf32>
    %9 = arith.mulf %8, %8 : vector<2x8x32xf32>
    %cst_7 = arith.constant dense<0.000000e+00> : vector<2x8xf32>
    %10 = vector.multi_reduction <add>, %9, %cst_7 [2] : vector<2x8x32xf32> to vector<2x8xf32>
    %11 = vector.shape_cast %10 : vector<2x8xf32> to vector<2x8x1xf32>
    %cst_8 = arith.constant 3.200000e+01 : f32
    %12 = vector.broadcast %cst_8 : f32 to vector<2x8x1xf32>
    %13 = arith.divf %11, %12 : vector<2x8x1xf32>
    %14 = vector.broadcast %6 : vector<2x8x1xf32> to vector<2x8x32xf32>
    %15 = arith.subf %0, %14 : vector<2x8x32xf32>
    %cst_9 = arith.constant 9.99999996E-13 : f32
    %16 = vector.broadcast %cst_9 : f32 to vector<2x8x1xf32>
    %17 = arith.addf %13, %16 : vector<2x8x1xf32>
    %18 = math.rsqrt %17 : vector<2x8x1xf32>
    %19 = vector.broadcast %18 : vector<2x8x1xf32> to vector<2x8x32xf32>
    %20 = arith.mulf %15, %19 : vector<2x8x32xf32>
    %21 = vector.shape_cast %1 : vector<1x32xf32> to vector<1x1x32xf32>
    %22 = vector.broadcast %21 : vector<1x1x32xf32> to vector<2x8x32xf32>
    %23 = arith.mulf %20, %22 : vector<2x8x32xf32>
    %24 = vector.shape_cast %2 : vector<1x32xf32> to vector<1x1x32xf32>
    %25 = vector.broadcast %24 : vector<1x1x32xf32> to vector<2x8x32xf32>
    %26 = arith.addf %23, %25 : vector<2x8x32xf32>
    %c0_10 = arith.constant 0 : index
    %c0_11 = arith.constant 0 : index
    %c0_12 = arith.constant 0 : index
    %27 = vector.load %arg1[%c0_10, %c0_11, %c0_12] : memref<2x1x8xf32, #tpu.memory_space<vmem>>, vector<2x1x8xf32>
    %28 = vector.shape_cast %26 : vector<2x8x32xf32> to vector<16x32xf32>
    %29 = arith.truncf %28 : vector<16x32xf32> to vector<16x32xbf16>
    %cst_13 = arith.constant 0.000000e+00 : f32
    %30 = vector.broadcast %cst_13 : f32 to vector<16x32xf32>
    %c0_14 = arith.constant 0 : index
    %c0_15 = arith.constant 0 : index
    %c0_16 = arith.constant 0 : index
    %c0_17 = arith.constant 0 : index
    %31 = vector.load %arg4[%c0_14, %c0_15, %c0_16, %c0_17] : memref<2x2x32x16xbf16, #tpu.memory_space<vmem>>, vector<1x1x32x16xbf16>
    %32 = vector.shape_cast %31 : vector<1x1x32x16xbf16> to vector<32x16xbf16>
    %cst_18 = arith.constant dense<0.000000e+00> : vector<16x16xf32>
    %33 = tpu.matmul %29, %32, %cst_18 {dimension_numbers = #tpu.dot_dimension_numbers<[1], [0], [0], [1], [0, 0, 1, 1], [], []>} : vector<16x32xbf16>, vector<32x16xbf16>, vector<16x16xf32> -> vector<16x16xf32>
    %c0_19 = arith.constant 0 : index
    %c0_20 = arith.constant 0 : index
    %c0_21 = arith.constant 0 : index
    %c0_22 = arith.constant 0 : index
    %34 = vector.load %arg5[%c0_19, %c0_20, %c0_21, %c0_22] : memref<2x2x1x16xf32, #tpu.memory_space<vmem>>, vector<1x1x1x16xf32>
    %35 = vector.shape_cast %34 : vector<1x1x1x16xf32> to vector<1x16xf32>
    %36 = vector.broadcast %35 : vector<1x16xf32> to vector<16x16xf32>
    %37 = arith.addf %33, %36 : vector<16x16xf32>
    %c0_23 = arith.constant 0 : index
    %c0_24 = arith.constant 0 : index
    %c0_25 = arith.constant 0 : index
    %c0_26 = arith.constant 0 : index
    %38 = vector.load %arg6[%c0_23, %c0_24, %c0_25, %c0_26] : memref<2x2x32x16xbf16, #tpu.memory_space<vmem>>, vector<1x1x32x16xbf16>
    %39 = vector.shape_cast %38 : vector<1x1x32x16xbf16> to vector<32x16xbf16>
    %cst_27 = arith.constant dense<0.000000e+00> : vector<16x16xf32>
    %40 = tpu.matmul %29, %39, %cst_27 {dimension_numbers = #tpu.dot_dimension_numbers<[1], [0], [0], [1], [0, 0, 1, 1], [], []>} : vector<16x32xbf16>, vector<32x16xbf16>, vector<16x16xf32> -> vector<16x16xf32>
    %c0_28 = arith.constant 0 : index
    %c0_29 = arith.constant 0 : index
    %c0_30 = arith.constant 0 : index
    %c0_31 = arith.constant 0 : index
    %41 = vector.load %arg7[%c0_28, %c0_29, %c0_30, %c0_31] : memref<2x2x1x16xf32, #tpu.memory_space<vmem>>, vector<1x1x1x16xf32>
    %42 = vector.shape_cast %41 : vector<1x1x1x16xf32> to vector<1x16xf32>
    %43 = vector.broadcast %42 : vector<1x16xf32> to vector<16x16xf32>
    %44 = arith.addf %40, %43 : vector<16x16xf32>
    %c0_32 = arith.constant 0 : index
    %c0_33 = arith.constant 0 : index
    %c0_34 = arith.constant 0 : index
    %c0_35 = arith.constant 0 : index
    %45 = vector.load %arg8[%c0_32, %c0_33, %c0_34, %c0_35] : memref<2x2x32x16xbf16, #tpu.memory_space<vmem>>, vector<1x1x32x16xbf16>
    %46 = vector.shape_cast %45 : vector<1x1x32x16xbf16> to vector<32x16xbf16>
    %cst_36 = arith.constant dense<0.000000e+00> : vector<16x16xf32>
    %47 = tpu.matmul %29, %46, %cst_36 {dimension_numbers = #tpu.dot_dimension_numbers<[1], [0], [0], [1], [0, 0, 1, 1], [], []>} : vector<16x32xbf16>, vector<32x16xbf16>, vector<16x16xf32> -> vector<16x16xf32>
    %c0_37 = arith.constant 0 : index
    %c0_38 = arith.constant 0 : index
    %c0_39 = arith.constant 0 : index
    %c0_40 = arith.constant 0 : index
    %48 = vector.load %arg9[%c0_37, %c0_38, %c0_39, %c0_40] : memref<2x2x1x16xf32, #tpu.memory_space<vmem>>, vector<1x1x1x16xf32>
    %49 = vector.shape_cast %48 : vector<1x1x1x16xf32> to vector<1x16xf32>
    %50 = vector.broadcast %49 : vector<1x16xf32> to vector<16x16xf32>
    %51 = arith.addf %47, %50 : vector<16x16xf32>
    %52 = vector.shape_cast %37 : vector<16x16xf32> to vector<2x8x16xf32>
    %53 = vector.shape_cast %44 : vector<16x16xf32> to vector<2x8x16xf32>
    %54 = vector.shape_cast %51 : vector<16x16xf32> to vector<2x8x16xf32>
    %55 = arith.truncf %52 : vector<2x8x16xf32> to vector<2x8x16xbf16>
    %56 = arith.truncf %53 : vector<2x8x16xf32> to vector<2x8x16xbf16>
    "tpu.trace_start"() <{level = 10 : i32, message = "bqd,bkd->bqk"}> : () -> ()
    %cst_41 = arith.constant dense<0.000000e+00> : vector<2x8x8xf32>
    %57 = tpu.matmul %55, %56, %cst_41 {dimension_numbers = #tpu.dot_dimension_numbers<[2], [2], [1], [1], [0, 0, 0, 1, 1, 1], [0], [0]>} : vector<2x8x16xbf16>, vector<2x8x16xbf16>, vector<2x8x8xf32> -> vector<2x8x8xf32>
    "tpu.trace_stop"() : () -> ()
    %cst_42 = arith.constant 2.500000e-01 : f32
    %58 = vector.broadcast %cst_42 : f32 to vector<2x8x8xf32>
    %59 = arith.mulf %57, %58 : vector<2x8x8xf32>
    %60 = vector.broadcast %27 : vector<2x1x8xf32> to vector<2x8x8xf32>
    %61 = arith.addf %59, %60 : vector<2x8x8xf32>
    %cst_43 = arith.constant dense<0xFF800000> : vector<2x8xf32>
    %62 = vector.multi_reduction <maximumf>, %61, %cst_43 [2] : vector<2x8x8xf32> to vector<2x8xf32>
    %63 = vector.shape_cast %62 : vector<2x8xf32> to vector<2x8x1xf32>
    %64 = vector.broadcast %63 : vector<2x8x1xf32> to vector<2x8x8xf32>
    %65 = arith.subf %61, %64 : vector<2x8x8xf32>
    %66 = math.exp %65 : vector<2x8x8xf32>
    %cst_44 = arith.constant dense<0.000000e+00> : vector<2x8xf32>
    %67 = vector.multi_reduction <add>, %66, %cst_44 [2] : vector<2x8x8xf32> to vector<2x8xf32>
    %68 = vector.shape_cast %67 : vector<2x8xf32> to vector<2x8x1xf32>
    %69 = tpu.reciprocal %68 {approx = true} : vector<2x8x1xf32> -> vector<2x8x1xf32>
    %70 = vector.broadcast %69 : vector<2x8x1xf32> to vector<2x8x8xf32>
    %71 = arith.mulf %66, %70 : vector<2x8x8xf32>
    %72 = arith.truncf %71 : vector<2x8x8xf32> to vector<2x8x8xbf16>
    %73 = arith.truncf %54 : vector<2x8x16xf32> to vector<2x8x16xbf16>
    "tpu.trace_start"() <{level = 10 : i32, message = "bqk,bkd->bqd"}> : () -> ()
    %cst_45 = arith.constant dense<0.000000e+00> : vector<2x8x16xf32>
    %74 = tpu.matmul %72, %73, %cst_45 {dimension_numbers = #tpu.dot_dimension_numbers<[2], [1], [1], [2], [0, 0, 0, 1, 1, 2], [0], [0]>} : vector<2x8x8xbf16>, vector<2x8x16xbf16>, vector<2x8x16xf32> -> vector<2x8x16xf32>
    "tpu.trace_stop"() : () -> ()
    %75 = vector.shape_cast %74 : vector<2x8x16xf32> to vector<16x16xf32>
    %76 = arith.truncf %75 : vector<16x16xf32> to vector<16x16xbf16>
    %c0_46 = arith.constant 0 : index
    %c0_47 = arith.constant 0 : index
    %c0_48 = arith.constant 0 : index
    %c0_49 = arith.constant 0 : index
    %77 = vector.load %arg10[%c0_46, %c0_47, %c0_48, %c0_49] : memref<2x2x16x32xbf16, #tpu.memory_space<vmem>>, vector<1x1x16x32xbf16>
    %78 = vector.shape_cast %77 : vector<1x1x16x32xbf16> to vector<16x32xbf16>
    %cst_50 = arith.constant dense<0.000000e+00> : vector<16x32xf32>
    %79 = tpu.matmul %76, %78, %cst_50 {dimension_numbers = #tpu.dot_dimension_numbers<[1], [0], [0], [1], [0, 0, 1, 1], [], []>} : vector<16x16xbf16>, vector<16x32xbf16>, vector<16x32xf32> -> vector<16x32xf32>
    %80 = arith.addf %30, %79 : vector<16x32xf32>
    %c0_51 = arith.constant 0 : index
    %c1 = arith.constant 1 : index
    %c0_52 = arith.constant 0 : index
    %c0_53 = arith.constant 0 : index
    %81 = vector.load %arg4[%c0_51, %c1, %c0_52, %c0_53] : memref<2x2x32x16xbf16, #tpu.memory_space<vmem>>, vector<1x1x32x16xbf16>
    %82 = vector.shape_cast %81 : vector<1x1x32x16xbf16> to vector<32x16xbf16>
    %cst_54 = arith.constant dense<0.000000e+00> : vector<16x16xf32>
    %83 = tpu.matmul %29, %82, %cst_54 {dimension_numbers = #tpu.dot_dimension_numbers<[1], [0], [0], [1], [0, 0, 1, 1], [], []>} : vector<16x32xbf16>, vector<32x16xbf16>, vector<16x16xf32> -> vector<16x16xf32>
    %c0_55 = arith.constant 0 : index
    %c1_56 = arith.constant 1 : index
    %c0_57 = arith.constant 0 : index
    %c0_58 = arith.constant 0 : index
    %84 = vector.load %arg5[%c0_55, %c1_56, %c0_57, %c0_58] : memref<2x2x1x16xf32, #tpu.memory_space<vmem>>, vector<1x1x1x16xf32>
    %85 = vector.shape_cast %84 : vector<1x1x1x16xf32> to vector<1x16xf32>
    %86 = vector.broadcast %85 : vector<1x16xf32> to vector<16x16xf32>
    %87 = arith.addf %83, %86 : vector<16x16xf32>
    %c0_59 = arith.constant 0 : index
    %c1_60 = arith.constant 1 : index
    %c0_61 = arith.constant 0 : index
    %c0_62 = arith.constant 0 : index
    %88 = vector.load %arg6[%c0_59, %c1_60, %c0_61, %c0_62] : memref<2x2x32x16xbf16, #tpu.memory_space<vmem>>, vector<1x1x32x16xbf16>
    %89 = vector.shape_cast %88 : vector<1x1x32x16xbf16> to vector<32x16xbf16>
    %cst_63 = arith.constant dense<0.000000e+00> : vector<16x16xf32>
    %90 = tpu.matmul %29, %89, %cst_63 {dimension_numbers = #tpu.dot_dimension_numbers<[1], [0], [0], [1], [0, 0, 1, 1], [], []>} : vector<16x32xbf16>, vector<32x16xbf16>, vector<16x16xf32> -> vector<16x16xf32>
    %c0_64 = arith.constant 0 : index
    %c1_65 = arith.constant 1 : index
    %c0_66 = arith.constant 0 : index
    %c0_67 = arith.constant 0 : index
    %91 = vector.load %arg7[%c0_64, %c1_65, %c0_66, %c0_67] : memref<2x2x1x16xf32, #tpu.memory_space<vmem>>, vector<1x1x1x16xf32>
    %92 = vector.shape_cast %91 : vector<1x1x1x16xf32> to vector<1x16xf32>
    %93 = vector.broadcast %92 : vector<1x16xf32> to vector<16x16xf32>
    %94 = arith.addf %90, %93 : vector<16x16xf32>
    %c0_68 = arith.constant 0 : index
    %c1_69 = arith.constant 1 : index
    %c0_70 = arith.constant 0 : index
    %c0_71 = arith.constant 0 : index
    %95 = vector.load %arg8[%c0_68, %c1_69, %c0_70, %c0_71] : memref<2x2x32x16xbf16, #tpu.memory_space<vmem>>, vector<1x1x32x16xbf16>
    %96 = vector.shape_cast %95 : vector<1x1x32x16xbf16> to vector<32x16xbf16>
    %cst_72 = arith.constant dense<0.000000e+00> : vector<16x16xf32>
    %97 = tpu.matmul %29, %96, %cst_72 {dimension_numbers = #tpu.dot_dimension_numbers<[1], [0], [0], [1], [0, 0, 1, 1], [], []>} : vector<16x32xbf16>, vector<32x16xbf16>, vector<16x16xf32> -> vector<16x16xf32>
    %c0_73 = arith.constant 0 : index
    %c1_74 = arith.constant 1 : index
    %c0_75 = arith.constant 0 : index
    %c0_76 = arith.constant 0 : index
    %98 = vector.load %arg9[%c0_73, %c1_74, %c0_75, %c0_76] : memref<2x2x1x16xf32, #tpu.memory_space<vmem>>, vector<1x1x1x16xf32>
    %99 = vector.shape_cast %98 : vector<1x1x1x16xf32> to vector<1x16xf32>
    %100 = vector.broadcast %99 : vector<1x16xf32> to vector<16x16xf32>
    %101 = arith.addf %97, %100 : vector<16x16xf32>
    %102 = vector.shape_cast %87 : vector<16x16xf32> to vector<2x8x16xf32>
    %103 = vector.shape_cast %94 : vector<16x16xf32> to vector<2x8x16xf32>
    %104 = vector.shape_cast %101 : vector<16x16xf32> to vector<2x8x16xf32>
    %105 = arith.truncf %102 : vector<2x8x16xf32> to vector<2x8x16xbf16>
    %106 = arith.truncf %103 : vector<2x8x16xf32> to vector<2x8x16xbf16>
    "tpu.trace_start"() <{level = 10 : i32, message = "bqd,bkd->bqk"}> : () -> ()
    %cst_77 = arith.constant dense<0.000000e+00> : vector<2x8x8xf32>
    %107 = tpu.matmul %105, %106, %cst_77 {dimension_numbers = #tpu.dot_dimension_numbers<[2], [2], [1], [1], [0, 0, 0, 1, 1, 1], [0], [0]>} : vector<2x8x16xbf16>, vector<2x8x16xbf16>, vector<2x8x8xf32> -> vector<2x8x8xf32>
    "tpu.trace_stop"() : () -> ()
    %cst_78 = arith.constant 2.500000e-01 : f32
    %108 = vector.broadcast %cst_78 : f32 to vector<2x8x8xf32>
    %109 = arith.mulf %107, %108 : vector<2x8x8xf32>
    %110 = vector.broadcast %27 : vector<2x1x8xf32> to vector<2x8x8xf32>
    %111 = arith.addf %109, %110 : vector<2x8x8xf32>
    %cst_79 = arith.constant dense<0xFF800000> : vector<2x8xf32>
    %112 = vector.multi_reduction <maximumf>, %111, %cst_79 [2] : vector<2x8x8xf32> to vector<2x8xf32>
    %113 = vector.shape_cast %112 : vector<2x8xf32> to vector<2x8x1xf32>
    %114 = vector.broadcast %113 : vector<2x8x1xf32> to vector<2x8x8xf32>
    %115 = arith.subf %111, %114 : vector<2x8x8xf32>
    %116 = math.exp %115 : vector<2x8x8xf32>
    %cst_80 = arith.constant dense<0.000000e+00> : vector<2x8xf32>
    %117 = vector.multi_reduction <add>, %116, %cst_80 [2] : vector<2x8x8xf32> to vector<2x8xf32>
    %118 = vector.shape_cast %117 : vector<2x8xf32> to vector<2x8x1xf32>
    %119 = tpu.reciprocal %118 {approx = true} : vector<2x8x1xf32> -> vector<2x8x1xf32>
    %120 = vector.broadcast %119 : vector<2x8x1xf32> to vector<2x8x8xf32>
    %121 = arith.mulf %116, %120 : vector<2x8x8xf32>
    %122 = arith.truncf %121 : vector<2x8x8xf32> to vector<2x8x8xbf16>
    %123 = arith.truncf %104 : vector<2x8x16xf32> to vector<2x8x16xbf16>
    "tpu.trace_start"() <{level = 10 : i32, message = "bqk,bkd->bqd"}> : () -> ()
    %cst_81 = arith.constant dense<0.000000e+00> : vector<2x8x16xf32>
    %124 = tpu.matmul %122, %123, %cst_81 {dimension_numbers = #tpu.dot_dimension_numbers<[2], [1], [1], [2], [0, 0, 0, 1, 1, 2], [0], [0]>} : vector<2x8x8xbf16>, vector<2x8x16xbf16>, vector<2x8x16xf32> -> vector<2x8x16xf32>
    "tpu.trace_stop"() : () -> ()
    %125 = vector.shape_cast %124 : vector<2x8x16xf32> to vector<16x16xf32>
    %126 = arith.truncf %125 : vector<16x16xf32> to vector<16x16xbf16>
    %c0_82 = arith.constant 0 : index
    %c1_83 = arith.constant 1 : index
    %c0_84 = arith.constant 0 : index
    %c0_85 = arith.constant 0 : index
    %127 = vector.load %arg10[%c0_82, %c1_83, %c0_84, %c0_85] : memref<2x2x16x32xbf16, #tpu.memory_space<vmem>>, vector<1x1x16x32xbf16>
    %128 = vector.shape_cast %127 : vector<1x1x16x32xbf16> to vector<16x32xbf16>
    %cst_86 = arith.constant dense<0.000000e+00> : vector<16x32xf32>
    %129 = tpu.matmul %126, %128, %cst_86 {dimension_numbers = #tpu.dot_dimension_numbers<[1], [0], [0], [1], [0, 0, 1, 1], [], []>} : vector<16x16xbf16>, vector<16x32xbf16>, vector<16x32xf32> -> vector<16x32xf32>
    %130 = arith.addf %80, %129 : vector<16x32xf32>
    %c0_87 = arith.constant 0 : index
    %c0_88 = arith.constant 0 : index
    %c0_89 = arith.constant 0 : index
    %131 = vector.load %arg11[%c0_87, %c0_88, %c0_89] : memref<2x1x32xf32, #tpu.memory_space<vmem>>, vector<1x1x32xf32>
    %132 = vector.shape_cast %131 : vector<1x1x32xf32> to vector<1x32xf32>
    %133 = vector.broadcast %132 : vector<1x32xf32> to vector<16x32xf32>
    %134 = arith.addf %130, %133 : vector<16x32xf32>
    %135 = arith.addf %28, %134 : vector<16x32xf32>
    %c0_90 = arith.constant 0 : index
    %c0_91 = arith.constant 0 : index
    %c0_92 = arith.constant 0 : index
    %136 = vector.load %arg12[%c0_90, %c0_91, %c0_92] : memref<2x1x32xf32, #tpu.memory_space<vmem>>, vector<1x1x32xf32>
    %137 = vector.shape_cast %136 : vector<1x1x32xf32> to vector<1x32xf32>
    %c0_93 = arith.constant 0 : index
    %c0_94 = arith.constant 0 : index
    %c0_95 = arith.constant 0 : index
    %138 = vector.load %arg13[%c0_93, %c0_94, %c0_95] : memref<2x1x32xf32, #tpu.memory_space<vmem>>, vector<1x1x32xf32>
    %139 = vector.shape_cast %138 : vector<1x1x32xf32> to vector<1x32xf32>
    %cst_96 = arith.constant dense<0.000000e+00> : vector<16xf32>
    %140 = vector.multi_reduction <add>, %135, %cst_96 [1] : vector<16x32xf32> to vector<16xf32>
    %141 = vector.shape_cast %140 : vector<16xf32> to vector<16x1xf32>
    %cst_97 = arith.constant 3.200000e+01 : f32
    %142 = vector.broadcast %cst_97 : f32 to vector<16x1xf32>
    %143 = arith.divf %141, %142 : vector<16x1xf32>
    %144 = vector.broadcast %143 : vector<16x1xf32> to vector<16x32xf32>
    %145 = arith.subf %135, %144 : vector<16x32xf32>
    %146 = arith.mulf %145, %145 : vector<16x32xf32>
    %cst_98 = arith.constant dense<0.000000e+00> : vector<16xf32>
    %147 = vector.multi_reduction <add>, %146, %cst_98 [1] : vector<16x32xf32> to vector<16xf32>
    %148 = vector.shape_cast %147 : vector<16xf32> to vector<16x1xf32>
    %cst_99 = arith.constant 3.200000e+01 : f32
    %149 = vector.broadcast %cst_99 : f32 to vector<16x1xf32>
    %150 = arith.divf %148, %149 : vector<16x1xf32>
    %151 = vector.broadcast %143 : vector<16x1xf32> to vector<16x32xf32>
    %152 = arith.subf %135, %151 : vector<16x32xf32>
    %cst_100 = arith.constant 9.99999996E-13 : f32
    %153 = vector.broadcast %cst_100 : f32 to vector<16x1xf32>
    %154 = arith.addf %150, %153 : vector<16x1xf32>
    %155 = math.rsqrt %154 : vector<16x1xf32>
    %156 = vector.broadcast %155 : vector<16x1xf32> to vector<16x32xf32>
    %157 = arith.mulf %152, %156 : vector<16x32xf32>
    %158 = vector.broadcast %137 : vector<1x32xf32> to vector<16x32xf32>
    %159 = arith.mulf %157, %158 : vector<16x32xf32>
    %160 = vector.broadcast %139 : vector<1x32xf32> to vector<16x32xf32>
    %161 = arith.addf %159, %160 : vector<16x32xf32>
    %162 = arith.truncf %161 : vector<16x32xf32> to vector<16x32xbf16>
    %c0_101 = arith.constant 0 : index
    %c0_102 = arith.constant 0 : index
    %c0_103 = arith.constant 0 : index
    %163 = vector.load %arg14[%c0_101, %c0_102, %c0_103] : memref<2x32x64xbf16, #tpu.memory_space<vmem>>, vector<1x32x64xbf16>
    %164 = vector.shape_cast %163 : vector<1x32x64xbf16> to vector<32x64xbf16>
    %cst_104 = arith.constant dense<0.000000e+00> : vector<16x64xf32>
    %165 = tpu.matmul %162, %164, %cst_104 {dimension_numbers = #tpu.dot_dimension_numbers<[1], [0], [0], [1], [0, 0, 1, 1], [], []>} : vector<16x32xbf16>, vector<32x64xbf16>, vector<16x64xf32> -> vector<16x64xf32>
    %c0_105 = arith.constant 0 : index
    %c0_106 = arith.constant 0 : index
    %c0_107 = arith.constant 0 : index
    %166 = vector.load %arg15[%c0_105, %c0_106, %c0_107] : memref<2x1x64xf32, #tpu.memory_space<vmem>>, vector<1x1x64xf32>
    %167 = vector.shape_cast %166 : vector<1x1x64xf32> to vector<1x64xf32>
    %168 = vector.broadcast %167 : vector<1x64xf32> to vector<16x64xf32>
    %169 = arith.addf %165, %168 : vector<16x64xf32>
    %170 = arith.mulf %169, %169 : vector<16x64xf32>
    %171 = arith.mulf %169, %170 : vector<16x64xf32>
    %cst_108 = arith.constant 4.471500e-02 : f32
    %172 = vector.broadcast %cst_108 : f32 to vector<16x64xf32>
    %173 = arith.mulf %172, %171 : vector<16x64xf32>
    %174 = arith.addf %169, %173 : vector<16x64xf32>
    %cst_109 = arith.constant 0.797884583 : f32
    %175 = vector.broadcast %cst_109 : f32 to vector<16x64xf32>
    %176 = arith.mulf %175, %174 : vector<16x64xf32>
    %177 = math.tanh %176 : vector<16x64xf32>
    %cst_110 = arith.constant 1.000000e+00 : f32
    %178 = vector.broadcast %cst_110 : f32 to vector<16x64xf32>
    %179 = arith.addf %178, %177 : vector<16x64xf32>
    %cst_111 = arith.constant 5.000000e-01 : f32
    %180 = vector.broadcast %cst_111 : f32 to vector<16x64xf32>
    %181 = arith.mulf %180, %179 : vector<16x64xf32>
    %182 = arith.mulf %169, %181 : vector<16x64xf32>
    %183 = arith.truncf %182 : vector<16x64xf32> to vector<16x64xbf16>
    %c0_112 = arith.constant 0 : index
    %c0_113 = arith.constant 0 : index
    %c0_114 = arith.constant 0 : index
    %184 = vector.load %arg16[%c0_112, %c0_113, %c0_114] : memref<2x64x32xbf16, #tpu.memory_space<vmem>>, vector<1x64x32xbf16>
    %185 = vector.shape_cast %184 : vector<1x64x32xbf16> to vector<64x32xbf16>
    %cst_115 = arith.constant dense<0.000000e+00> : vector<16x32xf32>
    %186 = tpu.matmul %183, %185, %cst_115 {dimension_numbers = #tpu.dot_dimension_numbers<[1], [0], [0], [1], [0, 0, 1, 1], [], []>} : vector<16x64xbf16>, vector<64x32xbf16>, vector<16x32xf32> -> vector<16x32xf32>
    %c0_116 = arith.constant 0 : index
    %c0_117 = arith.constant 0 : index
    %c0_118 = arith.constant 0 : index
    %187 = vector.load %arg17[%c0_116, %c0_117, %c0_118] : memref<2x1x32xf32, #tpu.memory_space<vmem>>, vector<1x1x32xf32>
    %188 = vector.shape_cast %187 : vector<1x1x32xf32> to vector<1x32xf32>
    %189 = vector.broadcast %188 : vector<1x32xf32> to vector<16x32xf32>
    %190 = arith.addf %186, %189 : vector<16x32xf32>
    %191 = arith.addf %161, %190 : vector<16x32xf32>
    %c0_119 = arith.constant 0 : index
    %c0_120 = arith.constant 0 : index
    %c0_121 = arith.constant 0 : index
    %192 = vector.load %arg18[%c0_119, %c0_120, %c0_121] : memref<2x1x32xf32, #tpu.memory_space<vmem>>, vector<1x1x32xf32>
    %193 = vector.shape_cast %192 : vector<1x1x32xf32> to vector<1x32xf32>
    %c0_122 = arith.constant 0 : index
    %c0_123 = arith.constant 0 : index
    %c0_124 = arith.constant 0 : index
    %194 = vector.load %arg19[%c0_122, %c0_123, %c0_124] : memref<2x1x32xf32, #tpu.memory_space<vmem>>, vector<1x1x32xf32>
    %195 = vector.shape_cast %194 : vector<1x1x32xf32> to vector<1x32xf32>
    %cst_125 = arith.constant dense<0.000000e+00> : vector<16xf32>
    %196 = vector.multi_reduction <add>, %191, %cst_125 [1] : vector<16x32xf32> to vector<16xf32>
    %197 = vector.shape_cast %196 : vector<16xf32> to vector<16x1xf32>
    %cst_126 = arith.constant 3.200000e+01 : f32
    %198 = vector.broadcast %cst_126 : f32 to vector<16x1xf32>
    %199 = arith.divf %197, %198 : vector<16x1xf32>
    %200 = vector.broadcast %199 : vector<16x1xf32> to vector<16x32xf32>
    %201 = arith.subf %191, %200 : vector<16x32xf32>
    %202 = arith.mulf %201, %201 : vector<16x32xf32>
    %cst_127 = arith.constant dense<0.000000e+00> : vector<16xf32>
    %203 = vector.multi_reduction <add>, %202, %cst_127 [1] : vector<16x32xf32> to vector<16xf32>
    %204 = vector.shape_cast %203 : vector<16xf32> to vector<16x1xf32>
    %cst_128 = arith.constant 3.200000e+01 : f32
    %205 = vector.broadcast %cst_128 : f32 to vector<16x1xf32>
    %206 = arith.divf %204, %205 : vector<16x1xf32>
    %207 = vector.broadcast %199 : vector<16x1xf32> to vector<16x32xf32>
    %208 = arith.subf %191, %207 : vector<16x32xf32>
    %cst_129 = arith.constant 9.99999996E-13 : f32
    %209 = vector.broadcast %cst_129 : f32 to vector<16x1xf32>
    %210 = arith.addf %206, %209 : vector<16x1xf32>
    %211 = math.rsqrt %210 : vector<16x1xf32>
    %212 = vector.broadcast %211 : vector<16x1xf32> to vector<16x32xf32>
    %213 = arith.mulf %208, %212 : vector<16x32xf32>
    %214 = vector.broadcast %193 : vector<1x32xf32> to vector<16x32xf32>
    %215 = arith.mulf %213, %214 : vector<16x32xf32>
    %216 = vector.broadcast %195 : vector<1x32xf32> to vector<16x32xf32>
    %217 = arith.addf %215, %216 : vector<16x32xf32>
    %218 = arith.truncf %217 : vector<16x32xf32> to vector<16x32xbf16>
    %cst_130 = arith.constant 0.000000e+00 : f32
    %219 = vector.broadcast %cst_130 : f32 to vector<16x32xf32>
    %c1_131 = arith.constant 1 : index
    %c0_132 = arith.constant 0 : index
    %c0_133 = arith.constant 0 : index
    %c0_134 = arith.constant 0 : index
    %220 = vector.load %arg4[%c1_131, %c0_132, %c0_133, %c0_134] : memref<2x2x32x16xbf16, #tpu.memory_space<vmem>>, vector<1x1x32x16xbf16>
    %221 = vector.shape_cast %220 : vector<1x1x32x16xbf16> to vector<32x16xbf16>
    %cst_135 = arith.constant dense<0.000000e+00> : vector<16x16xf32>
    %222 = tpu.matmul %218, %221, %cst_135 {dimension_numbers = #tpu.dot_dimension_numbers<[1], [0], [0], [1], [0, 0, 1, 1], [], []>} : vector<16x32xbf16>, vector<32x16xbf16>, vector<16x16xf32> -> vector<16x16xf32>
    %c1_136 = arith.constant 1 : index
    %c0_137 = arith.constant 0 : index
    %c0_138 = arith.constant 0 : index
    %c0_139 = arith.constant 0 : index
    %223 = vector.load %arg5[%c1_136, %c0_137, %c0_138, %c0_139] : memref<2x2x1x16xf32, #tpu.memory_space<vmem>>, vector<1x1x1x16xf32>
    %224 = vector.shape_cast %223 : vector<1x1x1x16xf32> to vector<1x16xf32>
    %225 = vector.broadcast %224 : vector<1x16xf32> to vector<16x16xf32>
    %226 = arith.addf %222, %225 : vector<16x16xf32>
    %c1_140 = arith.constant 1 : index
    %c0_141 = arith.constant 0 : index
    %c0_142 = arith.constant 0 : index
    %c0_143 = arith.constant 0 : index
    %227 = vector.load %arg6[%c1_140, %c0_141, %c0_142, %c0_143] : memref<2x2x32x16xbf16, #tpu.memory_space<vmem>>, vector<1x1x32x16xbf16>
    %228 = vector.shape_cast %227 : vector<1x1x32x16xbf16> to vector<32x16xbf16>
    %cst_144 = arith.constant dense<0.000000e+00> : vector<16x16xf32>
    %229 = tpu.matmul %218, %228, %cst_144 {dimension_numbers = #tpu.dot_dimension_numbers<[1], [0], [0], [1], [0, 0, 1, 1], [], []>} : vector<16x32xbf16>, vector<32x16xbf16>, vector<16x16xf32> -> vector<16x16xf32>
    %c1_145 = arith.constant 1 : index
    %c0_146 = arith.constant 0 : index
    %c0_147 = arith.constant 0 : index
    %c0_148 = arith.constant 0 : index
    %230 = vector.load %arg7[%c1_145, %c0_146, %c0_147, %c0_148] : memref<2x2x1x16xf32, #tpu.memory_space<vmem>>, vector<1x1x1x16xf32>
    %231 = vector.shape_cast %230 : vector<1x1x1x16xf32> to vector<1x16xf32>
    %232 = vector.broadcast %231 : vector<1x16xf32> to vector<16x16xf32>
    %233 = arith.addf %229, %232 : vector<16x16xf32>
    %c1_149 = arith.constant 1 : index
    %c0_150 = arith.constant 0 : index
    %c0_151 = arith.constant 0 : index
    %c0_152 = arith.constant 0 : index
    %234 = vector.load %arg8[%c1_149, %c0_150, %c0_151, %c0_152] : memref<2x2x32x16xbf16, #tpu.memory_space<vmem>>, vector<1x1x32x16xbf16>
    %235 = vector.shape_cast %234 : vector<1x1x32x16xbf16> to vector<32x16xbf16>
    %cst_153 = arith.constant dense<0.000000e+00> : vector<16x16xf32>
    %236 = tpu.matmul %218, %235, %cst_153 {dimension_numbers = #tpu.dot_dimension_numbers<[1], [0], [0], [1], [0, 0, 1, 1], [], []>} : vector<16x32xbf16>, vector<32x16xbf16>, vector<16x16xf32> -> vector<16x16xf32>
    %c1_154 = arith.constant 1 : index
    %c0_155 = arith.constant 0 : index
    %c0_156 = arith.constant 0 : index
    %c0_157 = arith.constant 0 : index
    %237 = vector.load %arg9[%c1_154, %c0_155, %c0_156, %c0_157] : memref<2x2x1x16xf32, #tpu.memory_space<vmem>>, vector<1x1x1x16xf32>
    %238 = vector.shape_cast %237 : vector<1x1x1x16xf32> to vector<1x16xf32>
    %239 = vector.broadcast %238 : vector<1x16xf32> to vector<16x16xf32>
    %240 = arith.addf %236, %239 : vector<16x16xf32>
    %241 = vector.shape_cast %226 : vector<16x16xf32> to vector<2x8x16xf32>
    %242 = vector.shape_cast %233 : vector<16x16xf32> to vector<2x8x16xf32>
    %243 = vector.shape_cast %240 : vector<16x16xf32> to vector<2x8x16xf32>
    %244 = arith.truncf %241 : vector<2x8x16xf32> to vector<2x8x16xbf16>
    %245 = arith.truncf %242 : vector<2x8x16xf32> to vector<2x8x16xbf16>
    "tpu.trace_start"() <{level = 10 : i32, message = "bqd,bkd->bqk"}> : () -> ()
    %cst_158 = arith.constant dense<0.000000e+00> : vector<2x8x8xf32>
    %246 = tpu.matmul %244, %245, %cst_158 {dimension_numbers = #tpu.dot_dimension_numbers<[2], [2], [1], [1], [0, 0, 0, 1, 1, 1], [0], [0]>} : vector<2x8x16xbf16>, vector<2x8x16xbf16>, vector<2x8x8xf32> -> vector<2x8x8xf32>
    "tpu.trace_stop"() : () -> ()
    %cst_159 = arith.constant 2.500000e-01 : f32
    %247 = vector.broadcast %cst_159 : f32 to vector<2x8x8xf32>
    %248 = arith.mulf %246, %247 : vector<2x8x8xf32>
    %249 = vector.broadcast %27 : vector<2x1x8xf32> to vector<2x8x8xf32>
    %250 = arith.addf %248, %249 : vector<2x8x8xf32>
    %cst_160 = arith.constant dense<0xFF800000> : vector<2x8xf32>
    %251 = vector.multi_reduction <maximumf>, %250, %cst_160 [2] : vector<2x8x8xf32> to vector<2x8xf32>
    %252 = vector.shape_cast %251 : vector<2x8xf32> to vector<2x8x1xf32>
    %253 = vector.broadcast %252 : vector<2x8x1xf32> to vector<2x8x8xf32>
    %254 = arith.subf %250, %253 : vector<2x8x8xf32>
    %255 = math.exp %254 : vector<2x8x8xf32>
    %cst_161 = arith.constant dense<0.000000e+00> : vector<2x8xf32>
    %256 = vector.multi_reduction <add>, %255, %cst_161 [2] : vector<2x8x8xf32> to vector<2x8xf32>
    %257 = vector.shape_cast %256 : vector<2x8xf32> to vector<2x8x1xf32>
    %258 = tpu.reciprocal %257 {approx = true} : vector<2x8x1xf32> -> vector<2x8x1xf32>
    %259 = vector.broadcast %258 : vector<2x8x1xf32> to vector<2x8x8xf32>
    %260 = arith.mulf %255, %259 : vector<2x8x8xf32>
    %261 = arith.truncf %260 : vector<2x8x8xf32> to vector<2x8x8xbf16>
    %262 = arith.truncf %243 : vector<2x8x16xf32> to vector<2x8x16xbf16>
    "tpu.trace_start"() <{level = 10 : i32, message = "bqk,bkd->bqd"}> : () -> ()
    %cst_162 = arith.constant dense<0.000000e+00> : vector<2x8x16xf32>
    %263 = tpu.matmul %261, %262, %cst_162 {dimension_numbers = #tpu.dot_dimension_numbers<[2], [1], [1], [2], [0, 0, 0, 1, 1, 2], [0], [0]>} : vector<2x8x8xbf16>, vector<2x8x16xbf16>, vector<2x8x16xf32> -> vector<2x8x16xf32>
    "tpu.trace_stop"() : () -> ()
    %264 = vector.shape_cast %263 : vector<2x8x16xf32> to vector<16x16xf32>
    %265 = arith.truncf %264 : vector<16x16xf32> to vector<16x16xbf16>
    %c1_163 = arith.constant 1 : index
    %c0_164 = arith.constant 0 : index
    %c0_165 = arith.constant 0 : index
    %c0_166 = arith.constant 0 : index
    %266 = vector.load %arg10[%c1_163, %c0_164, %c0_165, %c0_166] : memref<2x2x16x32xbf16, #tpu.memory_space<vmem>>, vector<1x1x16x32xbf16>
    %267 = vector.shape_cast %266 : vector<1x1x16x32xbf16> to vector<16x32xbf16>
    %cst_167 = arith.constant dense<0.000000e+00> : vector<16x32xf32>
    %268 = tpu.matmul %265, %267, %cst_167 {dimension_numbers = #tpu.dot_dimension_numbers<[1], [0], [0], [1], [0, 0, 1, 1], [], []>} : vector<16x16xbf16>, vector<16x32xbf16>, vector<16x32xf32> -> vector<16x32xf32>
    %269 = arith.addf %219, %268 : vector<16x32xf32>
    %c1_168 = arith.constant 1 : index
    %c1_169 = arith.constant 1 : index
    %c0_170 = arith.constant 0 : index
    %c0_171 = arith.constant 0 : index
    %270 = vector.load %arg4[%c1_168, %c1_169, %c0_170, %c0_171] : memref<2x2x32x16xbf16, #tpu.memory_space<vmem>>, vector<1x1x32x16xbf16>
    %271 = vector.shape_cast %270 : vector<1x1x32x16xbf16> to vector<32x16xbf16>
    %cst_172 = arith.constant dense<0.000000e+00> : vector<16x16xf32>
    %272 = tpu.matmul %218, %271, %cst_172 {dimension_numbers = #tpu.dot_dimension_numbers<[1], [0], [0], [1], [0, 0, 1, 1], [], []>} : vector<16x32xbf16>, vector<32x16xbf16>, vector<16x16xf32> -> vector<16x16xf32>
    %c1_173 = arith.constant 1 : index
    %c1_174 = arith.constant 1 : index
    %c0_175 = arith.constant 0 : index
    %c0_176 = arith.constant 0 : index
    %273 = vector.load %arg5[%c1_173, %c1_174, %c0_175, %c0_176] : memref<2x2x1x16xf32, #tpu.memory_space<vmem>>, vector<1x1x1x16xf32>
    %274 = vector.shape_cast %273 : vector<1x1x1x16xf32> to vector<1x16xf32>
    %275 = vector.broadcast %274 : vector<1x16xf32> to vector<16x16xf32>
    %276 = arith.addf %272, %275 : vector<16x16xf32>
    %c1_177 = arith.constant 1 : index
    %c1_178 = arith.constant 1 : index
    %c0_179 = arith.constant 0 : index
    %c0_180 = arith.constant 0 : index
    %277 = vector.load %arg6[%c1_177, %c1_178, %c0_179, %c0_180] : memref<2x2x32x16xbf16, #tpu.memory_space<vmem>>, vector<1x1x32x16xbf16>
    %278 = vector.shape_cast %277 : vector<1x1x32x16xbf16> to vector<32x16xbf16>
    %cst_181 = arith.constant dense<0.000000e+00> : vector<16x16xf32>
    %279 = tpu.matmul %218, %278, %cst_181 {dimension_numbers = #tpu.dot_dimension_numbers<[1], [0], [0], [1], [0, 0, 1, 1], [], []>} : vector<16x32xbf16>, vector<32x16xbf16>, vector<16x16xf32> -> vector<16x16xf32>
    %c1_182 = arith.constant 1 : index
    %c1_183 = arith.constant 1 : index
    %c0_184 = arith.constant 0 : index
    %c0_185 = arith.constant 0 : index
    %280 = vector.load %arg7[%c1_182, %c1_183, %c0_184, %c0_185] : memref<2x2x1x16xf32, #tpu.memory_space<vmem>>, vector<1x1x1x16xf32>
    %281 = vector.shape_cast %280 : vector<1x1x1x16xf32> to vector<1x16xf32>
    %282 = vector.broadcast %281 : vector<1x16xf32> to vector<16x16xf32>
    %283 = arith.addf %279, %282 : vector<16x16xf32>
    %c1_186 = arith.constant 1 : index
    %c1_187 = arith.constant 1 : index
    %c0_188 = arith.constant 0 : index
    %c0_189 = arith.constant 0 : index
    %284 = vector.load %arg8[%c1_186, %c1_187, %c0_188, %c0_189] : memref<2x2x32x16xbf16, #tpu.memory_space<vmem>>, vector<1x1x32x16xbf16>
    %285 = vector.shape_cast %284 : vector<1x1x32x16xbf16> to vector<32x16xbf16>
    %cst_190 = arith.constant dense<0.000000e+00> : vector<16x16xf32>
    %286 = tpu.matmul %218, %285, %cst_190 {dimension_numbers = #tpu.dot_dimension_numbers<[1], [0], [0], [1], [0, 0, 1, 1], [], []>} : vector<16x32xbf16>, vector<32x16xbf16>, vector<16x16xf32> -> vector<16x16xf32>
    %c1_191 = arith.constant 1 : index
    %c1_192 = arith.constant 1 : index
    %c0_193 = arith.constant 0 : index
    %c0_194 = arith.constant 0 : index
    %287 = vector.load %arg9[%c1_191, %c1_192, %c0_193, %c0_194] : memref<2x2x1x16xf32, #tpu.memory_space<vmem>>, vector<1x1x1x16xf32>
    %288 = vector.shape_cast %287 : vector<1x1x1x16xf32> to vector<1x16xf32>
    %289 = vector.broadcast %288 : vector<1x16xf32> to vector<16x16xf32>
    %290 = arith.addf %286, %289 : vector<16x16xf32>
    %291 = vector.shape_cast %276 : vector<16x16xf32> to vector<2x8x16xf32>
    %292 = vector.shape_cast %283 : vector<16x16xf32> to vector<2x8x16xf32>
    %293 = vector.shape_cast %290 : vector<16x16xf32> to vector<2x8x16xf32>
    %294 = arith.truncf %291 : vector<2x8x16xf32> to vector<2x8x16xbf16>
    %295 = arith.truncf %292 : vector<2x8x16xf32> to vector<2x8x16xbf16>
    "tpu.trace_start"() <{level = 10 : i32, message = "bqd,bkd->bqk"}> : () -> ()
    %cst_195 = arith.constant dense<0.000000e+00> : vector<2x8x8xf32>
    %296 = tpu.matmul %294, %295, %cst_195 {dimension_numbers = #tpu.dot_dimension_numbers<[2], [2], [1], [1], [0, 0, 0, 1, 1, 1], [0], [0]>} : vector<2x8x16xbf16>, vector<2x8x16xbf16>, vector<2x8x8xf32> -> vector<2x8x8xf32>
    "tpu.trace_stop"() : () -> ()
    %cst_196 = arith.constant 2.500000e-01 : f32
    %297 = vector.broadcast %cst_196 : f32 to vector<2x8x8xf32>
    %298 = arith.mulf %296, %297 : vector<2x8x8xf32>
    %299 = vector.broadcast %27 : vector<2x1x8xf32> to vector<2x8x8xf32>
    %300 = arith.addf %298, %299 : vector<2x8x8xf32>
    %cst_197 = arith.constant dense<0xFF800000> : vector<2x8xf32>
    %301 = vector.multi_reduction <maximumf>, %300, %cst_197 [2] : vector<2x8x8xf32> to vector<2x8xf32>
    %302 = vector.shape_cast %301 : vector<2x8xf32> to vector<2x8x1xf32>
    %303 = vector.broadcast %302 : vector<2x8x1xf32> to vector<2x8x8xf32>
    %304 = arith.subf %300, %303 : vector<2x8x8xf32>
    %305 = math.exp %304 : vector<2x8x8xf32>
    %cst_198 = arith.constant dense<0.000000e+00> : vector<2x8xf32>
    %306 = vector.multi_reduction <add>, %305, %cst_198 [2] : vector<2x8x8xf32> to vector<2x8xf32>
    %307 = vector.shape_cast %306 : vector<2x8xf32> to vector<2x8x1xf32>
    %308 = tpu.reciprocal %307 {approx = true} : vector<2x8x1xf32> -> vector<2x8x1xf32>
    %309 = vector.broadcast %308 : vector<2x8x1xf32> to vector<2x8x8xf32>
    %310 = arith.mulf %305, %309 : vector<2x8x8xf32>
    %311 = arith.truncf %310 : vector<2x8x8xf32> to vector<2x8x8xbf16>
    %312 = arith.truncf %293 : vector<2x8x16xf32> to vector<2x8x16xbf16>
    "tpu.trace_start"() <{level = 10 : i32, message = "bqk,bkd->bqd"}> : () -> ()
    %cst_199 = arith.constant dense<0.000000e+00> : vector<2x8x16xf32>
    %313 = tpu.matmul %311, %312, %cst_199 {dimension_numbers = #tpu.dot_dimension_numbers<[2], [1], [1], [2], [0, 0, 0, 1, 1, 2], [0], [0]>} : vector<2x8x8xbf16>, vector<2x8x16xbf16>, vector<2x8x16xf32> -> vector<2x8x16xf32>
    "tpu.trace_stop"() : () -> ()
    %314 = vector.shape_cast %313 : vector<2x8x16xf32> to vector<16x16xf32>
    %315 = arith.truncf %314 : vector<16x16xf32> to vector<16x16xbf16>
    %c1_200 = arith.constant 1 : index
    %c1_201 = arith.constant 1 : index
    %c0_202 = arith.constant 0 : index
    %c0_203 = arith.constant 0 : index
    %316 = vector.load %arg10[%c1_200, %c1_201, %c0_202, %c0_203] : memref<2x2x16x32xbf16, #tpu.memory_space<vmem>>, vector<1x1x16x32xbf16>
    %317 = vector.shape_cast %316 : vector<1x1x16x32xbf16> to vector<16x32xbf16>
    %cst_204 = arith.constant dense<0.000000e+00> : vector<16x32xf32>
    %318 = tpu.matmul %315, %317, %cst_204 {dimension_numbers = #tpu.dot_dimension_numbers<[1], [0], [0], [1], [0, 0, 1, 1], [], []>} : vector<16x16xbf16>, vector<16x32xbf16>, vector<16x32xf32> -> vector<16x32xf32>
    %319 = arith.addf %269, %318 : vector<16x32xf32>
    %c1_205 = arith.constant 1 : index
    %c0_206 = arith.constant 0 : index
    %c0_207 = arith.constant 0 : index
    %320 = vector.load %arg11[%c1_205, %c0_206, %c0_207] : memref<2x1x32xf32, #tpu.memory_space<vmem>>, vector<1x1x32xf32>
    %321 = vector.shape_cast %320 : vector<1x1x32xf32> to vector<1x32xf32>
    %322 = vector.broadcast %321 : vector<1x32xf32> to vector<16x32xf32>
    %323 = arith.addf %319, %322 : vector<16x32xf32>
    %324 = arith.addf %217, %323 : vector<16x32xf32>
    %c1_208 = arith.constant 1 : index
    %c0_209 = arith.constant 0 : index
    %c0_210 = arith.constant 0 : index
    %325 = vector.load %arg12[%c1_208, %c0_209, %c0_210] : memref<2x1x32xf32, #tpu.memory_space<vmem>>, vector<1x1x32xf32>
    %326 = vector.shape_cast %325 : vector<1x1x32xf32> to vector<1x32xf32>
    %c1_211 = arith.constant 1 : index
    %c0_212 = arith.constant 0 : index
    %c0_213 = arith.constant 0 : index
    %327 = vector.load %arg13[%c1_211, %c0_212, %c0_213] : memref<2x1x32xf32, #tpu.memory_space<vmem>>, vector<1x1x32xf32>
    %328 = vector.shape_cast %327 : vector<1x1x32xf32> to vector<1x32xf32>
    %cst_214 = arith.constant dense<0.000000e+00> : vector<16xf32>
    %329 = vector.multi_reduction <add>, %324, %cst_214 [1] : vector<16x32xf32> to vector<16xf32>
    %330 = vector.shape_cast %329 : vector<16xf32> to vector<16x1xf32>
    %cst_215 = arith.constant 3.200000e+01 : f32
    %331 = vector.broadcast %cst_215 : f32 to vector<16x1xf32>
    %332 = arith.divf %330, %331 : vector<16x1xf32>
    %333 = vector.broadcast %332 : vector<16x1xf32> to vector<16x32xf32>
    %334 = arith.subf %324, %333 : vector<16x32xf32>
    %335 = arith.mulf %334, %334 : vector<16x32xf32>
    %cst_216 = arith.constant dense<0.000000e+00> : vector<16xf32>
    %336 = vector.multi_reduction <add>, %335, %cst_216 [1] : vector<16x32xf32> to vector<16xf32>
    %337 = vector.shape_cast %336 : vector<16xf32> to vector<16x1xf32>
    %cst_217 = arith.constant 3.200000e+01 : f32
    %338 = vector.broadcast %cst_217 : f32 to vector<16x1xf32>
    %339 = arith.divf %337, %338 : vector<16x1xf32>
    %340 = vector.broadcast %332 : vector<16x1xf32> to vector<16x32xf32>
    %341 = arith.subf %324, %340 : vector<16x32xf32>
    %cst_218 = arith.constant 9.99999996E-13 : f32
    %342 = vector.broadcast %cst_218 : f32 to vector<16x1xf32>
    %343 = arith.addf %339, %342 : vector<16x1xf32>
    %344 = math.rsqrt %343 : vector<16x1xf32>
    %345 = vector.broadcast %344 : vector<16x1xf32> to vector<16x32xf32>
    %346 = arith.mulf %341, %345 : vector<16x32xf32>
    %347 = vector.broadcast %326 : vector<1x32xf32> to vector<16x32xf32>
    %348 = arith.mulf %346, %347 : vector<16x32xf32>
    %349 = vector.broadcast %328 : vector<1x32xf32> to vector<16x32xf32>
    %350 = arith.addf %348, %349 : vector<16x32xf32>
    %351 = arith.truncf %350 : vector<16x32xf32> to vector<16x32xbf16>
    %c1_219 = arith.constant 1 : index
    %c0_220 = arith.constant 0 : index
    %c0_221 = arith.constant 0 : index
    %352 = vector.load %arg14[%c1_219, %c0_220, %c0_221] : memref<2x32x64xbf16, #tpu.memory_space<vmem>>, vector<1x32x64xbf16>
    %353 = vector.shape_cast %352 : vector<1x32x64xbf16> to vector<32x64xbf16>
    %cst_222 = arith.constant dense<0.000000e+00> : vector<16x64xf32>
    %354 = tpu.matmul %351, %353, %cst_222 {dimension_numbers = #tpu.dot_dimension_numbers<[1], [0], [0], [1], [0, 0, 1, 1], [], []>} : vector<16x32xbf16>, vector<32x64xbf16>, vector<16x64xf32> -> vector<16x64xf32>
    %c1_223 = arith.constant 1 : index
    %c0_224 = arith.constant 0 : index
    %c0_225 = arith.constant 0 : index
    %355 = vector.load %arg15[%c1_223, %c0_224, %c0_225] : memref<2x1x64xf32, #tpu.memory_space<vmem>>, vector<1x1x64xf32>
    %356 = vector.shape_cast %355 : vector<1x1x64xf32> to vector<1x64xf32>
    %357 = vector.broadcast %356 : vector<1x64xf32> to vector<16x64xf32>
    %358 = arith.addf %354, %357 : vector<16x64xf32>
    %359 = arith.mulf %358, %358 : vector<16x64xf32>
    %360 = arith.mulf %358, %359 : vector<16x64xf32>
    %cst_226 = arith.constant 4.471500e-02 : f32
    %361 = vector.broadcast %cst_226 : f32 to vector<16x64xf32>
    %362 = arith.mulf %361, %360 : vector<16x64xf32>
    %363 = arith.addf %358, %362 : vector<16x64xf32>
    %cst_227 = arith.constant 0.797884583 : f32
    %364 = vector.broadcast %cst_227 : f32 to vector<16x64xf32>
    %365 = arith.mulf %364, %363 : vector<16x64xf32>
    %366 = math.tanh %365 : vector<16x64xf32>
    %cst_228 = arith.constant 1.000000e+00 : f32
    %367 = vector.broadcast %cst_228 : f32 to vector<16x64xf32>
    %368 = arith.addf %367, %366 : vector<16x64xf32>
    %cst_229 = arith.constant 5.000000e-01 : f32
    %369 = vector.broadcast %cst_229 : f32 to vector<16x64xf32>
    %370 = arith.mulf %369, %368 : vector<16x64xf32>
    %371 = arith.mulf %358, %370 : vector<16x64xf32>
    %372 = arith.truncf %371 : vector<16x64xf32> to vector<16x64xbf16>
    %c1_230 = arith.constant 1 : index
    %c0_231 = arith.constant 0 : index
    %c0_232 = arith.constant 0 : index
    %373 = vector.load %arg16[%c1_230, %c0_231, %c0_232] : memref<2x64x32xbf16, #tpu.memory_space<vmem>>, vector<1x64x32xbf16>
    %374 = vector.shape_cast %373 : vector<1x64x32xbf16> to vector<64x32xbf16>
    %cst_233 = arith.constant dense<0.000000e+00> : vector<16x32xf32>
    %375 = tpu.matmul %372, %374, %cst_233 {dimension_numbers = #tpu.dot_dimension_numbers<[1], [0], [0], [1], [0, 0, 1, 1], [], []>} : vector<16x64xbf16>, vector<64x32xbf16>, vector<16x32xf32> -> vector<16x32xf32>
    %c1_234 = arith.constant 1 : index
    %c0_235 = arith.constant 0 : index
    %c0_236 = arith.constant 0 : index
    %376 = vector.load %arg17[%c1_234, %c0_235, %c0_236] : memref<2x1x32xf32, #tpu.memory_space<vmem>>, vector<1x1x32xf32>
    %377 = vector.shape_cast %376 : vector<1x1x32xf32> to vector<1x32xf32>
    %378 = vector.broadcast %377 : vector<1x32xf32> to vector<16x32xf32>
    %379 = arith.addf %375, %378 : vector<16x32xf32>
    %380 = arith.addf %350, %379 : vector<16x32xf32>
    %c1_237 = arith.constant 1 : index
    %c0_238 = arith.constant 0 : index
    %c0_239 = arith.constant 0 : index
    %381 = vector.load %arg18[%c1_237, %c0_238, %c0_239] : memref<2x1x32xf32, #tpu.memory_space<vmem>>, vector<1x1x32xf32>
    %382 = vector.shape_cast %381 : vector<1x1x32xf32> to vector<1x32xf32>
    %c1_240 = arith.constant 1 : index
    %c0_241 = arith.constant 0 : index
    %c0_242 = arith.constant 0 : index
    %383 = vector.load %arg19[%c1_240, %c0_241, %c0_242] : memref<2x1x32xf32, #tpu.memory_space<vmem>>, vector<1x1x32xf32>
    %384 = vector.shape_cast %383 : vector<1x1x32xf32> to vector<1x32xf32>
    %cst_243 = arith.constant dense<0.000000e+00> : vector<16xf32>
    %385 = vector.multi_reduction <add>, %380, %cst_243 [1] : vector<16x32xf32> to vector<16xf32>
    %386 = vector.shape_cast %385 : vector<16xf32> to vector<16x1xf32>
    %cst_244 = arith.constant 3.200000e+01 : f32
    %387 = vector.broadcast %cst_244 : f32 to vector<16x1xf32>
    %388 = arith.divf %386, %387 : vector<16x1xf32>
    %389 = vector.broadcast %388 : vector<16x1xf32> to vector<16x32xf32>
    %390 = arith.subf %380, %389 : vector<16x32xf32>
    %391 = arith.mulf %390, %390 : vector<16x32xf32>
    %cst_245 = arith.constant dense<0.000000e+00> : vector<16xf32>
    %392 = vector.multi_reduction <add>, %391, %cst_245 [1] : vector<16x32xf32> to vector<16xf32>
    %393 = vector.shape_cast %392 : vector<16xf32> to vector<16x1xf32>
    %cst_246 = arith.constant 3.200000e+01 : f32
    %394 = vector.broadcast %cst_246 : f32 to vector<16x1xf32>
    %395 = arith.divf %393, %394 : vector<16x1xf32>
    %396 = vector.broadcast %388 : vector<16x1xf32> to vector<16x32xf32>
    %397 = arith.subf %380, %396 : vector<16x32xf32>
    %cst_247 = arith.constant 9.99999996E-13 : f32
    %398 = vector.broadcast %cst_247 : f32 to vector<16x1xf32>
    %399 = arith.addf %395, %398 : vector<16x1xf32>
    %400 = math.rsqrt %399 : vector<16x1xf32>
    %401 = vector.broadcast %400 : vector<16x1xf32> to vector<16x32xf32>
    %402 = arith.mulf %397, %401 : vector<16x32xf32>
    %403 = vector.broadcast %382 : vector<1x32xf32> to vector<16x32xf32>
    %404 = arith.mulf %402, %403 : vector<16x32xf32>
    %405 = vector.broadcast %384 : vector<1x32xf32> to vector<16x32xf32>
    %406 = arith.addf %404, %405 : vector<16x32xf32>
    %407 = vector.shape_cast %406 : vector<16x32xf32> to vector<2x8x32xf32>
    %408 = vector.extract_strided_slice %407 {offsets = [0, 0, 0], sizes = [2, 1, 32], strides = [1, 1, 1]} : vector<2x8x32xf32> to vector<2x1x32xf32>
    %409 = vector.shape_cast %408 : vector<2x1x32xf32> to vector<2x32xf32>
    %410 = arith.truncf %409 : vector<2x32xf32> to vector<2x32xbf16>
    %c0_248 = arith.constant 0 : index
    %c0_249 = arith.constant 0 : index
    %411 = vector.load %arg20[%c0_248, %c0_249] : memref<32x32xbf16, #tpu.memory_space<vmem>>, vector<32x32xbf16>
    %cst_250 = arith.constant dense<0.000000e+00> : vector<2x32xf32>
    %412 = tpu.matmul %410, %411, %cst_250 {dimension_numbers = #tpu.dot_dimension_numbers<[1], [0], [0], [1], [0, 0, 1, 1], [], []>} : vector<2x32xbf16>, vector<32x32xbf16>, vector<2x32xf32> -> vector<2x32xf32>
    %c0_251 = arith.constant 0 : index
    %c0_252 = arith.constant 0 : index
    %413 = vector.load %arg21[%c0_251, %c0_252] : memref<1x32xf32, #tpu.memory_space<vmem>>, vector<1x32xf32>
    %414 = vector.broadcast %413 : vector<1x32xf32> to vector<2x32xf32>
    %415 = arith.addf %412, %414 : vector<2x32xf32>
    %416 = math.tanh %415 : vector<2x32xf32>
    %c0_253 = arith.constant 0 : index
    %c0_254 = arith.constant 0 : index
    %417 = vector.load %arg24[%c0_253, %c0_254] : memref<2x32xf32, #tpu.memory_space<vmem>>, vector<2x32xf32>
    tpu.vector_store %arg24[%c0_253, %c0_254], %416 {strides = array<i32>} : memref<2x32xf32, #tpu.memory_space<vmem>>, vector<2x32xf32>,
    %418 = arith.truncf %416 : vector<2x32xf32> to vector<2x32xbf16>
    %c0_255 = arith.constant 0 : index
    %c0_256 = arith.constant 0 : index
    %419 = vector.load %arg22[%c0_255, %c0_256] : memref<32x128xbf16, #tpu.memory_space<vmem>>, vector<32x128xbf16>
    %cst_257 = arith.constant dense<0.000000e+00> : vector<2x128xf32>
    %420 = tpu.matmul %418, %419, %cst_257 {dimension_numbers = #tpu.dot_dimension_numbers<[1], [0], [0], [1], [0, 0, 1, 1], [], []>} : vector<2x32xbf16>, vector<32x128xbf16>, vector<2x128xf32> -> vector<2x128xf32>
    %c0_258 = arith.constant 0 : index
    %c0_259 = arith.constant 0 : index
    %421 = vector.load %arg23[%c0_258, %c0_259] : memref<1x128xf32, #tpu.memory_space<vmem>>, vector<1x128xf32>
    %422 = vector.broadcast %421 : vector<1x128xf32> to vector<2x128xf32>
    %423 = arith.addf %420, %422 : vector<2x128xf32>
    %c0_260 = arith.constant 0 : index
    %c0_261 = arith.constant 0 : index
    %424 = vector.load %arg25[%c0_260, %c0_261] : memref<2x128xf32, #tpu.memory_space<vmem>>, vector<2x128xf32>
    tpu.vector_store %arg25[%c0_260, %c0_261], %423 {strides = array<i32>} : memref<2x128xf32, #tpu.memory_space<vmem>>, vector<2x128xf32>,
    return
  }
}

</mosaic_0001>

<llo_original>
// kernel: _sentiment_with_pooled.1
$region0: #{_sentiment_with_pooled.1}
  #allocation0 [shape = 'u32[]', space=smem, size = 0x4, offset = 0x4, fixed_abs, tag = 'smem constant byte address 0x4 - core index']
  #allocation1 [shape = 'u32[72,128]{1,0:T(1,128)}', space=vmem, size = 0x9000, scoped, tag = 'internal scratch']
  %s0 = inlined_call_operand.vmem [shape: f32[2,8,32], index: 0, kind: input, shape index: {}]
  %s1 = inlined_call_operand.vmem [shape: f32[2,1,8], index: 1, kind: input, shape index: {}]
  %s2 = inlined_call_operand.vmem [shape: f32[1,32], index: 2, kind: input, shape index: {}]
  %s3 = inlined_call_operand.vmem [shape: f32[1,32], index: 3, kind: input, shape index: {}]
  %s4 = inlined_call_operand.vmem [shape: bf16[2,2,32,16], index: 4, kind: input, shape index: {}]
  %s5 = inlined_call_operand.vmem [shape: f32[2,2,1,16], index: 5, kind: input, shape index: {}]
  %s6 = inlined_call_operand.vmem [shape: bf16[2,2,32,16], index: 6, kind: input, shape index: {}]
  %s7 = inlined_call_operand.vmem [shape: f32[2,2,1,16], index: 7, kind: input, shape index: {}]
  %s8 = inlined_call_operand.vmem [shape: bf16[2,2,32,16], index: 8, kind: input, shape index: {}]
  %s9 = inlined_call_operand.vmem [shape: f32[2,2,1,16], index: 9, kind: input, shape index: {}]
  %s10 = inlined_call_operand.vmem [shape: bf16[2,2,16,32], index: 10, kind: input, shape index: {}]
  %s11 = inlined_call_operand.vmem [shape: f32[2,1,32], index: 11, kind: input, shape index: {}]
  %s12 = inlined_call_operand.vmem [shape: f32[2,1,32], index: 12, kind: input, shape index: {}]
  %s13 = inlined_call_operand.vmem [shape: f32[2,1,32], index: 13, kind: input, shape index: {}]
  %s14 = inlined_call_operand.vmem [shape: bf16[2,32,64], index: 14, kind: input, shape index: {}]
  %s15 = inlined_call_operand.vmem [shape: f32[2,1,64], index: 15, kind: input, shape index: {}]
  %s16 = inlined_call_operand.vmem [shape: bf16[2,64,32], index: 16, kind: input, shape index: {}]
  %s17 = inlined_call_operand.vmem [shape: f32[2,1,32], index: 17, kind: input, shape index: {}]
  %s18 = inlined_call_operand.vmem [shape: f32[2,1,32], index: 18, kind: input, shape index: {}]
  %s19 = inlined_call_operand.vmem [shape: f32[2,1,32], index: 19, kind: input, shape index: {}]
  %s20 = inlined_call_operand.vmem [shape: bf16[32,32], index: 20, kind: input, shape index: {}]
  %s21 = inlined_call_operand.vmem [shape: f32[1,32], index: 21, kind: input, shape index: {}]
  %s22 = inlined_call_operand.vmem [shape: bf16[32,128], index: 22, kind: input, shape index: {}]
  %s23 = inlined_call_operand.vmem [shape: f32[1,128], index: 23, kind: input, shape index: {}]
  %s24 = inlined_call_operand.hbm [shape: f32[2,32], index: 24, kind: output, shape index: {0}]
  %s25 = inlined_call_operand.hbm [shape: f32[2,128], index: 25, kind: output, shape index: {1}]
  %26 = xla_tuple %s24, %s25
  %s27 = sld [smem:[#allocation0]]
  $region114: #{_sentiment_with_pooled.1} parent=0
    _
  %s29 = ssub.s32 1, %s27
  %s30 = scalar_select 0, %s29, %s27
  $region1: #{_sentiment_with_pooled.1} parent=0
    #allocation2 [shape = 'u8[1024]{0}', space=vmem, size = 0x400, scoped, tag = 'output window, operand 0, single buffered']
    #allocation3 [shape = 's32[1]{0}', space=sflag, size = 0x4, scoped, tag = 'scoped memory for _sentiment_with_pooled.1']
    #allocation4 [shape = 'u8[1024]{0}', space=vmem, size = 0x400, scoped, tag = 'output window, operand 1, single buffered']
    #allocation5 [shape = 's32[1]{0}', space=sflag, size = 0x4, scoped, tag = 'scoped memory for _sentiment_with_pooled.1']
    %31 = vsyncpa [#allocation3], 0
    %32 = vsyncpa [#allocation5], 0
    // Predicated region
    $region2: #{_sentiment_with_pooled.1} parent=1 // pred_check
      _
    $region3: #{_sentiment_with_pooled.1} parent=1 // pred_check_branch
      %34 = sbr.rel (0) target = $region5
    $region4: #{_sentiment_with_pooled.1} parent=1 // pred_region
      _
    $region5: #{_sentiment_with_pooled.1} parent=1 // pred_fallthru
      _
    // Predicated region
    $region6: #{_sentiment_with_pooled.1} parent=1 // pred_check
      _
    $region7: #{_sentiment_with_pooled.1} parent=1 // pred_check_branch
      %36 = sbr.rel (0) target = $region9
    $region8: #{_sentiment_with_pooled.1} parent=1 // pred_region
      _
    $region9: #{_sentiment_with_pooled.1} parent=1 // pred_fallthru
      _
    // Predicated region
    $region10: #{_sentiment_with_pooled.1} parent=1 // pred_check
      _
    $region11: #{_sentiment_with_pooled.1} parent=1 // pred_check_branch
      %38 = sbr.rel (0) target = $region13
    $region12: #{_sentiment_with_pooled.1} parent=1 // pred_region
      _
    $region13: #{_sentiment_with_pooled.1} parent=1 // pred_fallthru
      _
    // Predicated region
    $region14: #{_sentiment_with_pooled.1} parent=1 // pred_check
      _
    $region15: #{_sentiment_with_pooled.1} parent=1 // pred_check_branch
      %40 = sbr.rel (0) target = $region17
    $region16: #{_sentiment_with_pooled.1} parent=1 // pred_region
      _
    $region17: #{_sentiment_with_pooled.1} parent=1 // pred_fallthru
      _
    // Predicated region
    $region18: #{_sentiment_with_pooled.1} parent=1 // pred_check
      _
    $region19: #{_sentiment_with_pooled.1} parent=1 // pred_check_branch
      %42 = sbr.rel (0) target = $region21
    $region20: #{_sentiment_with_pooled.1} parent=1 // pred_region
      _
    $region21: #{_sentiment_with_pooled.1} parent=1 // pred_fallthru
      _
    // Predicated region
    $region22: #{_sentiment_with_pooled.1} parent=1 // pred_check
      _
    $region23: #{_sentiment_with_pooled.1} parent=1 // pred_check_branch
      %44 = sbr.rel (0) target = $region25
    $region24: #{_sentiment_with_pooled.1} parent=1 // pred_region
      _
    $region25: #{_sentiment_with_pooled.1} parent=1 // pred_fallthru
      _
    // Predicated region
    $region26: #{_sentiment_with_pooled.1} parent=1 // pred_check
      _
    $region27: #{_sentiment_with_pooled.1} parent=1 // pred_check_branch
      %46 = sbr.rel (0) target = $region29
    $region28: #{_sentiment_with_pooled.1} parent=1 // pred_region
      _
    $region29: #{_sentiment_with_pooled.1} parent=1 // pred_fallthru
      _
    // Predicated region
    $region30: #{_sentiment_with_pooled.1} parent=1 // pred_check
      _
    $region31: #{_sentiment_with_pooled.1} parent=1 // pred_check_branch
      %48 = sbr.rel (0) target = $region33
    $region32: #{_sentiment_with_pooled.1} parent=1 // pred_region
      _
    $region33: #{_sentiment_with_pooled.1} parent=1 // pred_fallthru
      _
    // Predicated region
    $region34: #{_sentiment_with_pooled.1} parent=1 // pred_check
      _
    $region35: #{_sentiment_with_pooled.1} parent=1 // pred_check_branch
      %50 = sbr.rel (0) target = $region37
    $region36: #{_sentiment_with_pooled.1} parent=1 // pred_region
      _
    $region37: #{_sentiment_with_pooled.1} parent=1 // pred_fallthru
      _
    // Predicated region
    $region38: #{_sentiment_with_pooled.1} parent=1 // pred_check
      _
    $region39: #{_sentiment_with_pooled.1} parent=1 // pred_check_branch
      %52 = sbr.rel (0) target = $region41
    $region40: #{_sentiment_with_pooled.1} parent=1 // pred_region
      _
    $region41: #{_sentiment_with_pooled.1} parent=1 // pred_fallthru
      _
    // Predicated region
    $region42: #{_sentiment_with_pooled.1} parent=1 // pred_check
      _
    $region43: #{_sentiment_with_pooled.1} parent=1 // pred_check_branch
      %54 = sbr.rel (0) target = $region45
    $region44: #{_sentiment_with_pooled.1} parent=1 // pred_region
      _
    $region45: #{_sentiment_with_pooled.1} parent=1 // pred_fallthru
      _
    // Predicated region
    $region46: #{_sentiment_with_pooled.1} parent=1 // pred_check
      _
    $region47: #{_sentiment_with_pooled.1} parent=1 // pred_check_branch
      %56 = sbr.rel (0) target = $region49
    $region48: #{_sentiment_with_pooled.1} parent=1 // pred_region
      _
    $region49: #{_sentiment_with_pooled.1} parent=1 // pred_fallthru
      _
    // Predicated region
    $region50: #{_sentiment_with_pooled.1} parent=1 // pred_check
      _
    $region51: #{_sentiment_with_pooled.1} parent=1 // pred_check_branch
      %58 = sbr.rel (0) target = $region53
    $region52: #{_sentiment_with_pooled.1} parent=1 // pred_region
      _
    $region53: #{_sentiment_with_pooled.1} parent=1 // pred_fallthru
      _
    // Predicated region
    $region54: #{_sentiment_with_pooled.1} parent=1 // pred_check
      _
    $region55: #{_sentiment_with_pooled.1} parent=1 // pred_check_branch
      %60 = sbr.rel (0) target = $region57
    $region56: #{_sentiment_with_pooled.1} parent=1 // pred_region
      _
    $region57: #{_sentiment_with_pooled.1} parent=1 // pred_fallthru
      _
    // Predicated region
    $region58: #{_sentiment_with_pooled.1} parent=1 // pred_check
      _
    $region59: #{_sentiment_with_pooled.1} parent=1 // pred_check_branch
      %62 = sbr.rel (0) target = $region61
    $region60: #{_sentiment_with_pooled.1} parent=1 // pred_region
      _
    $region61: #{_sentiment_with_pooled.1} parent=1 // pred_fallthru
      _
    // Predicated region
    $region62: #{_sentiment_with_pooled.1} parent=1 // pred_check
      _
    $region63: #{_sentiment_with_pooled.1} parent=1 // pred_check_branch
      %64 = sbr.rel (0) target = $region65
    $region64: #{_sentiment_with_pooled.1} parent=1 // pred_region
      _
    $region65: #{_sentiment_with_pooled.1} parent=1 // pred_fallthru
      _
    // Predicated region
    $region66: #{_sentiment_with_pooled.1} parent=1 // pred_check
      _
    $region67: #{_sentiment_with_pooled.1} parent=1 // pred_check_branch
      %66 = sbr.rel (0) target = $region69
    $region68: #{_sentiment_with_pooled.1} parent=1 // pred_region
      _
    $region69: #{_sentiment_with_pooled.1} parent=1 // pred_fallthru
      _
    // Predicated region
    $region70: #{_sentiment_with_pooled.1} parent=1 // pred_check
      _
    $region71: #{_sentiment_with_pooled.1} parent=1 // pred_check_branch
      %68 = sbr.rel (0) target = $region73
    $region72: #{_sentiment_with_pooled.1} parent=1 // pred_region
      _
    $region73: #{_sentiment_with_pooled.1} parent=1 // pred_fallthru
      _
    // Predicated region
    $region74: #{_sentiment_with_pooled.1} parent=1 // pred_check
      _
    $region75: #{_sentiment_with_pooled.1} parent=1 // pred_check_branch
      %70 = sbr.rel (0) target = $region77
    $region76: #{_sentiment_with_pooled.1} parent=1 // pred_region
      _
    $region77: #{_sentiment_with_pooled.1} parent=1 // pred_fallthru
      _
    // Predicated region
    $region78: #{_sentiment_with_pooled.1} parent=1 // pred_check
      _
    $region79: #{_sentiment_with_pooled.1} parent=1 // pred_check_branch
      %72 = sbr.rel (0) target = $region81
    $region80: #{_sentiment_with_pooled.1} parent=1 // pred_region
      _
    $region81: #{_sentiment_with_pooled.1} parent=1 // pred_fallthru
      _
    // Predicated region
    $region82: #{_sentiment_with_pooled.1} parent=1 // pred_check
      _
    $region83: #{_sentiment_with_pooled.1} parent=1 // pred_check_branch
      %74 = sbr.rel (0) target = $region85
    $region84: #{_sentiment_with_pooled.1} parent=1 // pred_region
      _
    $region85: #{_sentiment_with_pooled.1} parent=1 // pred_fallthru
      _
    // Predicated region
    $region86: #{_sentiment_with_pooled.1} parent=1 // pred_check
      _
    $region87: #{_sentiment_with_pooled.1} parent=1 // pred_check_branch
      %76 = sbr.rel (0) target = $region89
    $region88: #{_sentiment_with_pooled.1} parent=1 // pred_region
      _
    $region89: #{_sentiment_with_pooled.1} parent=1 // pred_fallthru
      _
    // Predicated region
    $region90: #{_sentiment_with_pooled.1} parent=1 // pred_check
      _
    $region91: #{_sentiment_with_pooled.1} parent=1 // pred_check_branch
      %78 = sbr.rel (0) target = $region93
    $region92: #{_sentiment_with_pooled.1} parent=1 // pred_region
      _
    $region93: #{_sentiment_with_pooled.1} parent=1 // pred_fallthru
      _
    // Predicated region
    $region94: #{_sentiment_with_pooled.1} parent=1 // pred_check
      _
    $region95: #{_sentiment_with_pooled.1} parent=1 // pred_check_branch
      %80 = sbr.rel (0) target = $region97
    $region96: #{_sentiment_with_pooled.1} parent=1 // pred_region
      _
    $region97: #{_sentiment_with_pooled.1} parent=1 // pred_fallthru
      _
    %v82 = vld [vmem:[%s0] sm:$0xff]
    %v83 = vld [vmem:[%s0 + $0x8] sm:$0xff]
    %v84 = vld [vmem:[%s2] sm:$0x1]
    %v85 = vld [vmem:[%s3] sm:$0x1]
    %vm86 = vcmask 261120
    %v87 = vsel %vm86, %v82, 0.0
    %88 = vadd.xlane.f32.xlu0 %v87
    %v89 = vpop.xlane.xlu0 %88
    %v90 = vsel %vm86, %v83, 0.0
    %91 = vadd.xlane.f32.xlu0 %v90
    %v92 = vpop.xlane.xlu0 %91
    %v93 = vrcp.pop 32.0
    %v94 = vmul.f32 32.0, %v93
    %v95 = vsub.f32 1.0, %v94
    %v96 = vmul.f32 %v93, %v95
    %v97 = vadd.f32 %v93, %v96
    %vm98 = vweird.f32 %v93
    %v99 = vsel %vm98, %v93, %v97
    %v100 = vmul.f32 %v89, %v99
    %v101 = vmul.f32 %v92, %v99
    %v102 = vsub.f32 %v82, %v100
    %v103 = vsub.f32 %v83, %v101
    %v104 = vmul.f32 %v102, %v102
    %v105 = vmul.f32 %v103, %v103
    %v106 = vsel %vm86, %v104, 0.0
    %107 = vadd.xlane.f32.xlu0 %v106
    %v108 = vpop.xlane.xlu0 %107
    %v109 = vsel %vm86, %v105, 0.0
    %110 = vadd.xlane.f32.xlu0 %v109
    %v111 = vpop.xlane.xlu0 %110
    %v112 = vmul.f32 %v108, %v99
    %v113 = vmul.f32 %v111, %v99
    %v114 = vadd.f32 %v112, 1e-12
    %v115 = vadd.f32 %v113, 1e-12
    %v116 = vrsqrt.pop %v114
    %v117 = vmul.f32 %v116, %v114
    %v118 = vmul.f32 %v117, %v116
    %v119 = vmul.f32 0.5, %v118
    %v120 = vsub.f32 1.5, %v119
    %v121 = vmul.f32 %v116, %v120
    %vm122 = vweird.f32 %v114
    %vm123 = vweird.f32 %v116
    %vm124 = vmor %vm122, %vm123
    %v125 = vsel %vm124, %v116, %v121
    %v126 = vrsqrt.pop %v115
    %v127 = vmul.f32 %v126, %v115
    %v128 = vmul.f32 %v127, %v126
    %v129 = vmul.f32 0.5, %v128
    %v130 = vsub.f32 1.5, %v129
    %v131 = vmul.f32 %v126, %v130
    %vm132 = vweird.f32 %v115
    %vm133 = vweird.f32 %v126
    %vm134 = vmor %vm132, %vm133
    %v135 = vsel %vm134, %v126, %v131
    %v136 = vmul.f32 %v102, %v125
    %v137 = vmul.f32 %v103, %v135
    %v139 = vperm.slane %v84, 0
    %v141 = vmul.f32 %v136, %v139
    %v142 = vmul.f32 %v137, %v139
    %v144 = vperm.slane %v85, 0
    %v146 = vadd.f32 %v141, %v144
    %v147 = vadd.f32 %v142, %v144
    %v148 = vld [vmem:[%s1] sm:$0x1]
    %v149 = vld [vmem:[%s1 + $0x1] sm:$0x1]
    %v150 = vpack.c.bf16 %v147, %v146
    %v151 = vld [vmem:[%s4] sm:$0xf]
    %v152 = vld [vmem:[%s4 + $0x4] sm:$0xf]
    %v153 = vld [vmem:[%s4 + $0x8] sm:$0xf]
    %v154 = vld [vmem:[%s4 + $0xc] sm:$0xf]
    %v155 = vld [vmem:[%s5] sm:$0x1]
    %v157 = vperm.slane %v155, 0
    %v163 = vunpack.c.l.b16 %v151
    %v164 = vunpack.c.l.b16 %v152
    %v165 = vunpack.c.l.b16 %v153
    %v166 = vunpack.c.l.b16 %v154
    %v167 = vpack.c.b16 %v164, %v163
    %v168 = vpack.c.b16 %v166, %v165
    %v172 = vsel %vm86, %v150, 0
    %174 = vmatpush.bf16.msra.mxu0 0
    %175 = vmatpush.bf16.msra.mxu0 0
    %176 = vmatpush.bf16.msra.mxu0 0
    %177 = vmatpush.bf16.msra.mxu0 0
    %178 = vmatpush.bf16.msra.mxu0 0
    %179 = vmatpush.bf16.msra.mxu0 0
    %180 = vmatpush.bf16.msra.mxu0 %v168
    %181 = vmatpush.bf16.msra.mxu0 %v167
    %182 = vmatmul.bf16.gmra.mxu0 %v172
    %v183 = vpop.f32.mrf.mxu0
    %v184 = vadd.f32 %v157, %v183
    %v185 = vpop.f32.mrf.mxu0
    %v186 = vadd.f32 %v157, %v185
    %187 = vdwg.mxu0
    %v188 = vld [vmem:[%s6] sm:$0xf]
    %v189 = vld [vmem:[%s6 + $0x4] sm:$0xf]
    %v190 = vld [vmem:[%s6 + $0x8] sm:$0xf]
    %v191 = vld [vmem:[%s6 + $0xc] sm:$0xf]
    %v192 = vld [vmem:[%s7] sm:$0x1]
    %v194 = vperm.slane %v192, 0
    %v200 = vunpack.c.l.b16 %v188
    %v201 = vunpack.c.l.b16 %v189
    %v202 = vunpack.c.l.b16 %v190
    %v203 = vunpack.c.l.b16 %v191
    %v204 = vpack.c.b16 %v201, %v200
    %v205 = vpack.c.b16 %v203, %v202
    %208 = vmatpush.bf16.msra.mxu0 0
    %209 = vmatpush.bf16.msra.mxu0 0
    %210 = vmatpush.bf16.msra.mxu0 0
    %211 = vmatpush.bf16.msra.mxu0 0
    %212 = vmatpush.bf16.msra.mxu0 0
    %213 = vmatpush.bf16.msra.mxu0 0
    %214 = vmatpush.bf16.msra.mxu0 %v205
    %215 = vmatpush.bf16.msra.mxu0 %v204
    %216 = vmatmul.bf16.gmra.mxu0 %v172
    %v217 = vpop.f32.mrf.mxu0
    %v218 = vadd.f32 %v194, %v217
    %v219 = vpop.f32.mrf.mxu0
    %v220 = vadd.f32 %v194, %v219
    %221 = vdwg.mxu0
    %v222 = vld [vmem:[%s8] sm:$0xf]
    %v223 = vld [vmem:[%s8 + $0x4] sm:$0xf]
    %v224 = vld [vmem:[%s8 + $0x8] sm:$0xf]
    %v225 = vld [vmem:[%s8 + $0xc] sm:$0xf]
    %v226 = vld [vmem:[%s9] sm:$0x1]
    %v228 = vperm.slane %v226, 0
    %v234 = vunpack.c.l.b16 %v222
    %v235 = vunpack.c.l.b16 %v223
    %v236 = vunpack.c.l.b16 %v224
    %v237 = vunpack.c.l.b16 %v225
    %v238 = vpack.c.b16 %v235, %v234
    %v239 = vpack.c.b16 %v237, %v236
    %242 = vmatpush.bf16.msra.mxu0 0
    %243 = vmatpush.bf16.msra.mxu0 0
    %244 = vmatpush.bf16.msra.mxu0 0
    %245 = vmatpush.bf16.msra.mxu0 0
    %246 = vmatpush.bf16.msra.mxu0 0
    %247 = vmatpush.bf16.msra.mxu0 0
    %248 = vmatpush.bf16.msra.mxu0 %v239
    %249 = vmatpush.bf16.msra.mxu0 %v238
    %250 = vmatmul.bf16.gmra.mxu0 %v172
    %v251 = vpop.f32.mrf.mxu0
    %v252 = vadd.f32 %v228, %v251
    %v253 = vpop.f32.mrf.mxu0
    %v254 = vadd.f32 %v228, %v253
    %255 = vdwg.mxu0
    %v256 = vpack.c.bf16 %v184, %v184
    %v257 = vpack.c.bf16 %v186, %v186
    %v258 = vpack.c.bf16 %v218, %v218
    %v259 = vpack.c.bf16 %v220, %v220
    %vm260 = vcmask 130048
    %v262 = vsel %vm260, %v256, 0
    %v265 = vsel %vm260, %v258, 0
    %267 = vmatpush.bf16.xpose.msra.mxu0 0
    %268 = vmatpush.bf16.xpose.msra.mxu0 0
    %269 = vmatpush.bf16.xpose.msra.mxu0 0
    %270 = vmatpush.bf16.xpose.msra.mxu0 0
    %271 = vmatpush.bf16.xpose.msra.mxu0 0
    %272 = vmatpush.bf16.xpose.msra.mxu0 0
    %273 = vmatpush.bf16.xpose.msra.mxu0 0
    %274 = vmatpush.bf16.xpose.msra.mxu0 %v265
    %275 = vmatmul.bf16.gmra.mxu0 %v262
    %v276 = vpop.f32.mrf.mxu0
    %v277 = vadd.f32 0.0, %v276
    %v278 = vpop.f32.mrf.mxu0
    %279 = vdwg.mxu0
    %v281 = vsel %vm260, %v257, 0
    %v284 = vsel %vm260, %v259, 0
    %286 = vmatpush.bf16.xpose.msra.mxu0 0
    %287 = vmatpush.bf16.xpose.msra.mxu0 0
    %288 = vmatpush.bf16.xpose.msra.mxu0 0
    %289 = vmatpush.bf16.xpose.msra.mxu0 0
    %290 = vmatpush.bf16.xpose.msra.mxu0 0
    %291 = vmatpush.bf16.xpose.msra.mxu0 0
    %292 = vmatpush.bf16.xpose.msra.mxu0 0
    %293 = vmatpush.bf16.xpose.msra.mxu0 %v284
    %294 = vmatmul.bf16.gmra.mxu0 %v281
    %v295 = vpop.f32.mrf.mxu0
    %v296 = vadd.f32 0.0, %v295
    %v297 = vpop.f32.mrf.mxu0
    %298 = vdwg.mxu0
    %v299 = vmul.f32 %v277, 0.25
    %v300 = vmul.f32 %v296, 0.25
    %v303 = vperm.slane %v148, 0
    %v304 = vperm.slane %v149, 0
    %v307 = vadd.f32 %v299, %v303
    %v308 = vadd.f32 %v300, %v304
    %vm309 = vcmask 64512
    %v310 = vsel %vm309, %v307, -inf
    %311 = vmax.xlane.f32.xlu0 %v310
    %v312 = vpop.xlane.xlu0 %311
    %v313 = vsel %vm309, %v308, -inf
    %314 = vmax.xlane.f32.xlu0 %v313
    %v315 = vpop.xlane.xlu0 %314
    %v316 = vsub.f32 %v307, %v312
    %v317 = vsub.f32 %v308, %v315
    %v318 = vmul.f32 %v316, 1.442695
    %v319 = vpow.pop %v318
    %v320 = vmul.f32 %v317, 1.442695
    %v321 = vpow.pop %v320
    %v322 = vsel %vm309, %v319, 0.0
    %323 = vadd.xlane.f32.xlu0 %v322
    %v324 = vpop.xlane.xlu0 %323
    %v325 = vsel %vm309, %v321, 0.0
    %326 = vadd.xlane.f32.xlu0 %v325
    %v327 = vpop.xlane.xlu0 %326
    %v328 = vrcp.pop %v324
    %v329 = vrcp.pop %v327
    %v330 = vmul.f32 %v319, %v328
    %v331 = vmul.f32 %v321, %v329
    %v332 = vpack.c.bf16 %v330, %v330
    %v333 = vpack.c.bf16 %v331, %v331
    %v334 = vpack.c.bf16 %v252, %v252
    %v335 = vpack.c.bf16 %v254, %v254
    %v337 = vsel %vm309, %v332, 0
    %vm339 = vcmask 1043456
    %v341 = vsel %vm339, %v334, 0
    %343 = vmatpush.bf16.msra.mxu0 0
    %344 = vmatpush.bf16.msra.mxu0 0
    %345 = vmatpush.bf16.msra.mxu0 0
    %346 = vmatpush.bf16.msra.mxu0 0
    %347 = vmatpush.bf16.msra.mxu0 0
    %348 = vmatpush.bf16.msra.mxu0 0
    %349 = vmatpush.bf16.msra.mxu0 0
    %350 = vmatpush.bf16.msra.mxu0 %v341
    %351 = vmatmul.bf16.gmra.mxu0 %v337
    %v352 = vpop.f32.mrf.mxu0
    %v353 = vadd.f32 0.0, %v352
    %v354 = vpop.f32.mrf.mxu0
    %355 = vdwg.mxu0
    %v357 = vsel %vm309, %v333, 0
    %v360 = vsel %vm339, %v335, 0
    %362 = vmatpush.bf16.msra.mxu0 0
    %363 = vmatpush.bf16.msra.mxu0 0
    %364 = vmatpush.bf16.msra.mxu0 0
    %365 = vmatpush.bf16.msra.mxu0 0
    %366 = vmatpush.bf16.msra.mxu0 0
    %367 = vmatpush.bf16.msra.mxu0 0
    %368 = vmatpush.bf16.msra.mxu0 0
    %369 = vmatpush.bf16.msra.mxu0 %v360
    %370 = vmatmul.bf16.gmra.mxu0 %v357
    %v371 = vpop.f32.mrf.mxu0
    %v372 = vadd.f32 0.0, %v371
    %v373 = vpop.f32.mrf.mxu0
    %374 = vdwg.mxu0
    %v375 = vpack.c.bf16 %v372, %v353
    %v376 = vld [vmem:[%s10] sm:$0xf]
    %v377 = vld [vmem:[%s10 + $0x4] sm:$0xf]
    %s378 = scalar_lea.vmem %s4, 16
    %v379 = vld [vmem:[%s378] sm:$0xf]
    %v380 = vld [vmem:[%s378 + $0x4] sm:$0xf]
    %v381 = vld [vmem:[%s378 + $0x8] sm:$0xf]
    %v382 = vld [vmem:[%s378 + $0xc] sm:$0xf]
    %s383 = scalar_lea.vmem %s5, 1
    %v384 = vld [vmem:[%s383] sm:$0x1]
    %v386 = vperm.slane %v384, 0
    %v392 = vunpack.c.l.b16 %v379
    %v393 = vunpack.c.l.b16 %v380
    %v394 = vunpack.c.l.b16 %v381
    %v395 = vunpack.c.l.b16 %v382
    %v396 = vpack.c.b16 %v393, %v392
    %v397 = vpack.c.b16 %v395, %v394
    %400 = vmatpush.bf16.msra.mxu0 0
    %401 = vmatpush.bf16.msra.mxu0 0
    %402 = vmatpush.bf16.msra.mxu0 0
    %403 = vmatpush.bf16.msra.mxu0 0
    %404 = vmatpush.bf16.msra.mxu0 0
    %405 = vmatpush.bf16.msra.mxu0 0
    %406 = vmatpush.bf16.msra.mxu0 %v397
    %407 = vmatpush.bf16.msra.mxu0 %v396
    %408 = vmatmul.bf16.gmra.mxu0 %v172
    %v409 = vpop.f32.mrf.mxu0
    %v410 = vadd.f32 %v386, %v409
    %v411 = vpop.f32.mrf.mxu0
    %v412 = vadd.f32 %v386, %v411
    %413 = vdwg.mxu0
    %s414 = scalar_lea.vmem %s6, 16
    %v415 = vld [vmem:[%s414] sm:$0xf]
    %v416 = vld [vmem:[%s414 + $0x4] sm:$0xf]
    %v417 = vld [vmem:[%s414 + $0x8] sm:$0xf]
    %v418 = vld [vmem:[%s414 + $0xc] sm:$0xf]
    %s419 = scalar_lea.vmem %s7, 1
    %v420 = vld [vmem:[%s419] sm:$0x1]
    %v422 = vperm.slane %v420, 0
    %v428 = vunpack.c.l.b16 %v415
    %v429 = vunpack.c.l.b16 %v416
    %v430 = vunpack.c.l.b16 %v417
    %v431 = vunpack.c.l.b16 %v418
    %v432 = vpack.c.b16 %v429, %v428
    %v433 = vpack.c.b16 %v431, %v430
    %436 = vmatpush.bf16.msra.mxu0 0
    %437 = vmatpush.bf16.msra.mxu0 0
    %438 = vmatpush.bf16.msra.mxu0 0
    %439 = vmatpush.bf16.msra.mxu0 0
    %440 = vmatpush.bf16.msra.mxu0 0
    %441 = vmatpush.bf16.msra.mxu0 0
    %442 = vmatpush.bf16.msra.mxu0 %v433
    %443 = vmatpush.bf16.msra.mxu0 %v432
    %444 = vmatmul.bf16.gmra.mxu0 %v172
    %v445 = vpop.f32.mrf.mxu0
    %v446 = vadd.f32 %v422, %v445
    %v447 = vpop.f32.mrf.mxu0
    %v448 = vadd.f32 %v422, %v447
    %449 = vdwg.mxu0
    %s450 = scalar_lea.vmem %s8, 16
    %v451 = vld [vmem:[%s450] sm:$0xf]
    %v452 = vld [vmem:[%s450 + $0x4] sm:$0xf]
    %v453 = vld [vmem:[%s450 + $0x8] sm:$0xf]
    %v454 = vld [vmem:[%s450 + $0xc] sm:$0xf]
    %s455 = scalar_lea.vmem %s9, 1
    %v456 = vld [vmem:[%s455] sm:$0x1]
    %v458 = vperm.slane %v456, 0
    %v464 = vunpack.c.l.b16 %v451
    %v465 = vunpack.c.l.b16 %v452
    %v466 = vunpack.c.l.b16 %v453
    %v467 = vunpack.c.l.b16 %v454
    %v468 = vpack.c.b16 %v465, %v464
    %v469 = vpack.c.b16 %v467, %v466
    %472 = vmatpush.bf16.msra.mxu0 0
    %473 = vmatpush.bf16.msra.mxu0 0
    %474 = vmatpush.bf16.msra.mxu0 0
    %475 = vmatpush.bf16.msra.mxu0 0
    %476 = vmatpush.bf16.msra.mxu0 0
    %477 = vmatpush.bf16.msra.mxu0 0
    %478 = vmatpush.bf16.msra.mxu0 %v469
    %479 = vmatpush.bf16.msra.mxu0 %v468
    %480 = vmatmul.bf16.gmra.mxu0 %v172
    %v481 = vpop.f32.mrf.mxu0
    %v482 = vadd.f32 %v458, %v481
    %v483 = vpop.f32.mrf.mxu0
    %v484 = vadd.f32 %v458, %v483
    %485 = vdwg.mxu0
    %v486 = vpack.c.bf16 %v410, %v410
    %v487 = vpack.c.bf16 %v412, %v412
    %v488 = vpack.c.bf16 %v446, %v446
    %v489 = vpack.c.bf16 %v448, %v448
    %v491 = vsel %vm260, %v486, 0
    %v494 = vsel %vm260, %v488, 0
    %496 = vmatpush.bf16.xpose.msra.mxu0 0
    %497 = vmatpush.bf16.xpose.msra.mxu0 0
    %498 = vmatpush.bf16.xpose.msra.mxu0 0
    %499 = vmatpush.bf16.xpose.msra.mxu0 0
    %500 = vmatpush.bf16.xpose.msra.mxu0 0
    %501 = vmatpush.bf16.xpose.msra.mxu0 0
    %502 = vmatpush.bf16.xpose.msra.mxu0 0
    %503 = vmatpush.bf16.xpose.msra.mxu0 %v494
    %504 = vmatmul.bf16.gmra.mxu0 %v491
    %v505 = vpop.f32.mrf.mxu0
    %v506 = vadd.f32 0.0, %v505
    %v507 = vpop.f32.mrf.mxu0
    %508 = vdwg.mxu0
    %v510 = vsel %vm260, %v487, 0
    %v513 = vsel %vm260, %v489, 0
    %515 = vmatpush.bf16.xpose.msra.mxu0 0
    %516 = vmatpush.bf16.xpose.msra.mxu0 0
    %517 = vmatpush.bf16.xpose.msra.mxu0 0
    %518 = vmatpush.bf16.xpose.msra.mxu0 0
    %519 = vmatpush.bf16.xpose.msra.mxu0 0
    %520 = vmatpush.bf16.xpose.msra.mxu0 0
    %521 = vmatpush.bf16.xpose.msra.mxu0 0
    %522 = vmatpush.bf16.xpose.msra.mxu0 %v513
    %523 = vmatmul.bf16.gmra.mxu0 %v510
    %v524 = vpop.f32.mrf.mxu0
    %v525 = vadd.f32 0.0, %v524
    %v526 = vpop.f32.mrf.mxu0
    %527 = vdwg.mxu0
    %v528 = vmul.f32 %v506, 0.25
    %v529 = vmul.f32 %v525, 0.25
    %v530 = vadd.f32 %v528, %v303
    %v531 = vadd.f32 %v529, %v304
    %v532 = vsel %vm309, %v530, -inf
    %533 = vmax.xlane.f32.xlu0 %v532
    %v534 = vpop.xlane.xlu0 %533
    %v535 = vsel %vm309, %v531, -inf
    %536 = vmax.xlane.f32.xlu0 %v535
    %v537 = vpop.xlane.xlu0 %536
    %v538 = vsub.f32 %v530, %v534
    %v539 = vsub.f32 %v531, %v537
    %v540 = vmul.f32 %v538, 1.442695
    %v541 = vpow.pop %v540
    %v542 = vmul.f32 %v539, 1.442695
    %v543 = vpow.pop %v542
    %v544 = vsel %vm309, %v541, 0.0
    %545 = vadd.xlane.f32.xlu0 %v544
    %v546 = vpop.xlane.xlu0 %545
    %v547 = vsel %vm309, %v543, 0.0
    %548 = vadd.xlane.f32.xlu0 %v547
    %v549 = vpop.xlane.xlu0 %548
    %v550 = vrcp.pop %v546
    %v551 = vrcp.pop %v549
    %v552 = vmul.f32 %v541, %v550
    %v553 = vmul.f32 %v543, %v551
    %v554 = vpack.c.bf16 %v552, %v552
    %v555 = vpack.c.bf16 %v553, %v553
    %v556 = vpack.c.bf16 %v482, %v482
    %v557 = vpack.c.bf16 %v484, %v484
    %v559 = vsel %vm309, %v554, 0
    %v562 = vsel %vm339, %v556, 0
    %564 = vmatpush.bf16.msra.mxu0 0
    %565 = vmatpush.bf16.msra.mxu0 0
    %566 = vmatpush.bf16.msra.mxu0 0
    %567 = vmatpush.bf16.msra.mxu0 0
    %568 = vmatpush.bf16.msra.mxu0 0
    %569 = vmatpush.bf16.msra.mxu0 0
    %570 = vmatpush.bf16.msra.mxu0 0
    %571 = vmatpush.bf16.msra.mxu0 %v562
    %572 = vmatmul.bf16.gmra.mxu0 %v559
    %v573 = vpop.f32.mrf.mxu0
    %v574 = vadd.f32 0.0, %v573
    %v575 = vpop.f32.mrf.mxu0
    %576 = vdwg.mxu0
    %v578 = vsel %vm309, %v555, 0
    %v581 = vsel %vm339, %v557, 0
    %583 = vmatpush.bf16.msra.mxu0 0
    %584 = vmatpush.bf16.msra.mxu0 0
    %585 = vmatpush.bf16.msra.mxu0 0
    %586 = vmatpush.bf16.msra.mxu0 0
    %587 = vmatpush.bf16.msra.mxu0 0
    %588 = vmatpush.bf16.msra.mxu0 0
    %589 = vmatpush.bf16.msra.mxu0 0
    %590 = vmatpush.bf16.msra.mxu0 %v581
    %591 = vmatmul.bf16.gmra.mxu0 %v578
    %v592 = vpop.f32.mrf.mxu0
    %v593 = vadd.f32 0.0, %v592
    %v594 = vpop.f32.mrf.mxu0
    %595 = vdwg.mxu0
    %v596 = vpack.c.bf16 %v593, %v574
    %s597 = scalar_lea.vmem %s10, 8
    %v598 = vld [vmem:[%s597] sm:$0xf]
    %v599 = vld [vmem:[%s597 + $0x4] sm:$0xf]
    %v602 = vunpack.c.l.b16 %v598
    %v603 = vunpack.c.l.b16 %v599
    %v604 = vpack.c.b16 %v603, %v602
    %v607 = vsel %vm260, %v596, 0
    %609 = vmatpush.bf16.msra.mxu0 0
    %610 = vmatpush.bf16.msra.mxu0 0
    %611 = vmatpush.bf16.msra.mxu0 0
    %612 = vmatpush.bf16.msra.mxu0 0
    %613 = vmatpush.bf16.msra.mxu0 0
    %614 = vmatpush.bf16.msra.mxu0 0
    %615 = vmatpush.bf16.msra.mxu0 0
    %616 = vmatpush.bf16.msra.mxu0 %v604
    %617 = vmatmul.bf16.gmra.mxu0 %v607
    %v618 = vpop.f32.mrf.mxu0
    %v619 = vadd.f32 0.0, %v618
    %v620 = vpop.f32.mrf.mxu0
    %v621 = vadd.f32 0.0, %v620
    %622 = vdwg.mxu0
    %v625 = vunpack.c.l.b16 %v376
    %v626 = vunpack.c.l.b16 %v377
    %v627 = vpack.c.b16 %v626, %v625
    %v630 = vsel %vm260, %v375, 0
    %632 = vmatpush.bf16.msra.mxu0 0
    %633 = vmatpush.bf16.msra.mxu0 0
    %634 = vmatpush.bf16.msra.mxu0 0
    %635 = vmatpush.bf16.msra.mxu0 0
    %636 = vmatpush.bf16.msra.mxu0 0
    %637 = vmatpush.bf16.msra.mxu0 0
    %638 = vmatpush.bf16.msra.mxu0 0
    %639 = vmatpush.bf16.msra.mxu0 %v627
    %640 = vmatmul.bf16.gmra.mxu0 %v630
    %v641 = vpop.f32.mrf.mxu0
    %v642 = vadd.f32 %v619, %v641
    %v643 = vpop.f32.mrf.mxu0
    %v644 = vadd.f32 %v621, %v643
    %645 = vdwg.mxu0
    %v646 = vld [vmem:[%s11] sm:$0x1]
    %v648 = vperm.slane %v646, 0
    %v650 = vadd.f32 %v642, %v648
    %v651 = vadd.f32 %v644, %v648
    %v652 = vadd.f32 %v146, %v650
    %v653 = vadd.f32 %v147, %v651
    %v654 = vld [vmem:[%s12] sm:$0x1]
    %v655 = vld [vmem:[%s13] sm:$0x1]
    %v656 = vsel %vm86, %v652, 0.0
    %657 = vadd.xlane.f32.xlu0 %v656
    %v658 = vpop.xlane.xlu0 %657
    %v659 = vsel %vm86, %v653, 0.0
    %660 = vadd.xlane.f32.xlu0 %v659
    %v661 = vpop.xlane.xlu0 %660
    %v662 = vmul.f32 %v658, %v99
    %v663 = vmul.f32 %v661, %v99
    %v664 = vsub.f32 %v652, %v662
    %v665 = vsub.f32 %v653, %v663
    %v666 = vmul.f32 %v664, %v664
    %v667 = vmul.f32 %v665, %v665
    %v668 = vsel %vm86, %v666, 0.0
    %669 = vadd.xlane.f32.xlu0 %v668
    %v670 = vpop.xlane.xlu0 %669
    %v671 = vsel %vm86, %v667, 0.0
    %672 = vadd.xlane.f32.xlu0 %v671
    %v673 = vpop.xlane.xlu0 %672
    %v674 = vmul.f32 %v670, %v99
    %v675 = vmul.f32 %v673, %v99
    %v676 = vadd.f32 %v674, 1e-12
    %v677 = vadd.f32 %v675, 1e-12
    %v678 = vrsqrt.pop %v676
    %v679 = vmul.f32 %v678, %v676
    %v680 = vmul.f32 %v679, %v678
    %v681 = vmul.f32 0.5, %v680
    %v682 = vsub.f32 1.5, %v681
    %v683 = vmul.f32 %v678, %v682
    %vm684 = vweird.f32 %v676
    %vm685 = vweird.f32 %v678
    %vm686 = vmor %vm684, %vm685
    %v687 = vsel %vm686, %v678, %v683
    %v688 = vrsqrt.pop %v677
    %v689 = vmul.f32 %v688, %v677
    %v690 = vmul.f32 %v689, %v688
    %v691 = vmul.f32 0.5, %v690
    %v692 = vsub.f32 1.5, %v691
    %v693 = vmul.f32 %v688, %v692
    %vm694 = vweird.f32 %v677
    %vm695 = vweird.f32 %v688
    %vm696 = vmor %vm694, %vm695
    %v697 = vsel %vm696, %v688, %v693
    %v698 = vmul.f32 %v664, %v687
    %v699 = vmul.f32 %v665, %v697
    %v701 = vperm.slane %v654, 0
    %v703 = vmul.f32 %v698, %v701
    %v704 = vmul.f32 %v699, %v701
    %v706 = vperm.slane %v655, 0
    %v708 = vadd.f32 %v703, %v706
    %v709 = vadd.f32 %v704, %v706
    %v710 = vpack.c.bf16 %v709, %v708
    %v711 = vld [vmem:[%s14] sm:$0xf]
    %v712 = vld [vmem:[%s14 + $0x4] sm:$0xf]
    %v713 = vld [vmem:[%s14 + $0x8] sm:$0xf]
    %v714 = vld [vmem:[%s14 + $0xc] sm:$0xf]
    %v715 = vld [vmem:[%s15] sm:$0x1]
    %v717 = vperm.slane %v715, 0
    %v723 = vunpack.c.l.b16 %v711
    %v724 = vunpack.c.l.b16 %v712
    %v725 = vunpack.c.l.b16 %v713
    %v726 = vunpack.c.l.b16 %v714
    %v727 = vpack.c.b16 %v724, %v723
    %v728 = vpack.c.b16 %v726, %v725
    %v732 = vsel %vm86, %v710, 0
    %734 = vmatpush.bf16.msra.mxu0 0
    %735 = vmatpush.bf16.msra.mxu0 0
    %736 = vmatpush.bf16.msra.mxu0 0
    %737 = vmatpush.bf16.msra.mxu0 0
    %738 = vmatpush.bf16.msra.mxu0 0
    %739 = vmatpush.bf16.msra.mxu0 0
    %740 = vmatpush.bf16.msra.mxu0 %v728
    %741 = vmatpush.bf16.msra.mxu0 %v727
    %742 = vmatmul.bf16.gmra.mxu0 %v732
    %v743 = vpop.f32.mrf.mxu0
    %v744 = vadd.f32 %v717, %v743
    %v745 = vpop.f32.mrf.mxu0
    %v746 = vadd.f32 %v717, %v745
    %747 = vdwg.mxu0
    %v748 = vmul.f32 %v744, %v744
    %v749 = vmul.f32 %v746, %v746
    %v750 = vmul.f32 %v744, %v748
    %v751 = vmul.f32 %v746, %v749
    %v752 = vmul.f32 %v750, 0.044715
    %v753 = vmul.f32 %v751, 0.044715
    %v754 = vadd.f32 %v744, %v752
    %v755 = vadd.f32 %v746, %v753
    %v756 = vmul.f32 %v754, 0.7978846
    %v757 = vmul.f32 %v755, 0.7978846
    %v758 = vtanh.pop %v756
    %v759 = vtanh.pop %v757
    %v760 = vadd.f32 %v758, 1.0
    %v761 = vadd.f32 %v759, 1.0
    %v762 = vmul.f32 %v760, 0.5
    %v763 = vmul.f32 %v761, 0.5
    %v764 = vmul.f32 %v744, %v762
    %v765 = vmul.f32 %v746, %v763
    %v766 = vpack.c.bf16 %v765, %v764
    %v767 = vld [vmem:[%s16] sm:$0xf]
    %v768 = vld [vmem:[%s16 + $0x4] sm:$0xf]
    %v769 = vld [vmem:[%s16 + $0x8] sm:$0xf]
    %v770 = vld [vmem:[%s16 + $0xc] sm:$0xf]
    %v771 = vld [vmem:[%s16 + $0x10] sm:$0xf]
    %v772 = vld [vmem:[%s16 + $0x14] sm:$0xf]
    %v773 = vld [vmem:[%s16 + $0x18] sm:$0xf]
    %v774 = vld [vmem:[%s16 + $0x1c] sm:$0xf]
    %v775 = vld [vmem:[%s17] sm:$0x1]
    %v777 = vperm.slane %v775, 0
    %v787 = vunpack.c.l.b16 %v767
    %v788 = vunpack.c.l.b16 %v768
    %v789 = vunpack.c.l.b16 %v769
    %v790 = vunpack.c.l.b16 %v770
    %v791 = vunpack.c.l.b16 %v771
    %v792 = vunpack.c.l.b16 %v772
    %v793 = vunpack.c.l.b16 %v773
    %v794 = vunpack.c.l.b16 %v774
    %v795 = vpack.c.b16 %v788, %v787
    %v796 = vpack.c.b16 %v790, %v789
    %v797 = vpack.c.b16 %v792, %v791
    %v798 = vpack.c.b16 %v794, %v793
    %vm803 = vcmask 523264
    %v805 = vsel %vm803, %v766, 0
    %807 = vmatpush.bf16.msra.mxu0 0
    %808 = vmatpush.bf16.msra.mxu0 0
    %809 = vmatpush.bf16.msra.mxu0 0
    %810 = vmatpush.bf16.msra.mxu0 0
    %811 = vmatpush.bf16.msra.mxu0 %v798
    %812 = vmatpush.bf16.msra.mxu0 %v797
    %813 = vmatpush.bf16.msra.mxu0 %v796
    %814 = vmatpush.bf16.msra.mxu0 %v795
    %815 = vmatmul.bf16.gmra.mxu0 %v805
    %v816 = vpop.f32.mrf.mxu0
    %v817 = vadd.f32 %v777, %v816
    %v818 = vpop.f32.mrf.mxu0
    %v819 = vadd.f32 %v777, %v818
    %820 = vdwg.mxu0
    %v821 = vadd.f32 %v708, %v817
    %v822 = vadd.f32 %v709, %v819
    %v823 = vld [vmem:[%s18] sm:$0x1]
    %v824 = vld [vmem:[%s19] sm:$0x1]
    %v825 = vsel %vm86, %v821, 0.0
    %826 = vadd.xlane.f32.xlu0 %v825
    %v827 = vpop.xlane.xlu0 %826
    %v828 = vsel %vm86, %v822, 0.0
    %829 = vadd.xlane.f32.xlu0 %v828
    %v830 = vpop.xlane.xlu0 %829
    %v831 = vmul.f32 %v827, %v99
    %v832 = vmul.f32 %v830, %v99
    %v833 = vsub.f32 %v821, %v831
    %v834 = vsub.f32 %v822, %v832
    %v835 = vmul.f32 %v833, %v833
    %v836 = vmul.f32 %v834, %v834
    %v837 = vsel %vm86, %v835, 0.0
    %838 = vadd.xlane.f32.xlu0 %v837
    %v839 = vpop.xlane.xlu0 %838
    %v840 = vsel %vm86, %v836, 0.0
    %841 = vadd.xlane.f32.xlu0 %v840
    %v842 = vpop.xlane.xlu0 %841
    %v843 = vmul.f32 %v839, %v99
    %v844 = vmul.f32 %v842, %v99
    %v845 = vadd.f32 %v843, 1e-12
    %v846 = vadd.f32 %v844, 1e-12
    %v847 = vrsqrt.pop %v845
    %v848 = vmul.f32 %v847, %v845
    %v849 = vmul.f32 %v848, %v847
    %v850 = vmul.f32 0.5, %v849
    %v851 = vsub.f32 1.5, %v850
    %v852 = vmul.f32 %v847, %v851
    %vm853 = vweird.f32 %v845
    %vm854 = vweird.f32 %v847
    %vm855 = vmor %vm853, %vm854
    %v856 = vsel %vm855, %v847, %v852
    %v857 = vrsqrt.pop %v846
    %v858 = vmul.f32 %v857, %v846
    %v859 = vmul.f32 %v858, %v857
    %v860 = vmul.f32 0.5, %v859
    %v861 = vsub.f32 1.5, %v860
    %v862 = vmul.f32 %v857, %v861
    %vm863 = vweird.f32 %v846
    %vm864 = vweird.f32 %v857
    %vm865 = vmor %vm863, %vm864
    %v866 = vsel %vm865, %v857, %v862
    %v867 = vmul.f32 %v833, %v856
    %v868 = vmul.f32 %v834, %v866
    %v870 = vperm.slane %v823, 0
    %v872 = vmul.f32 %v867, %v870
    %v873 = vmul.f32 %v868, %v870
    %v875 = vperm.slane %v824, 0
    %v877 = vadd.f32 %v872, %v875
    %v878 = vadd.f32 %v873, %v875
    %v879 = vpack.c.bf16 %v878, %v877
    %s880 = scalar_lea.vmem %s4, 32
    %v881 = vld [vmem:[%s880] sm:$0xf]
    %v882 = vld [vmem:[%s880 + $0x4] sm:$0xf]
    %v883 = vld [vmem:[%s880 + $0x8] sm:$0xf]
    %v884 = vld [vmem:[%s880 + $0xc] sm:$0xf]
    %s885 = scalar_lea.vmem %s5, 2
    %v886 = vld [vmem:[%s885] sm:$0x1]
    %v888 = vperm.slane %v886, 0
    %v894 = vunpack.c.l.b16 %v881
    %v895 = vunpack.c.l.b16 %v882
    %v896 = vunpack.c.l.b16 %v883
    %v897 = vunpack.c.l.b16 %v884
    %v898 = vpack.c.b16 %v895, %v894
    %v899 = vpack.c.b16 %v897, %v896
    %v903 = vsel %vm86, %v879, 0
    %905 = vmatpush.bf16.msra.mxu0 0
    %906 = vmatpush.bf16.msra.mxu0 0
    %907 = vmatpush.bf16.msra.mxu0 0
    %908 = vmatpush.bf16.msra.mxu0 0
    %909 = vmatpush.bf16.msra.mxu0 0
    %910 = vmatpush.bf16.msra.mxu0 0
    %911 = vmatpush.bf16.msra.mxu0 %v899
    %912 = vmatpush.bf16.msra.mxu0 %v898
    %913 = vmatmul.bf16.gmra.mxu0 %v903
    %v914 = vpop.f32.mrf.mxu0
    %v915 = vadd.f32 %v888, %v914
    %v916 = vpop.f32.mrf.mxu0
    %v917 = vadd.f32 %v888, %v916
    %918 = vdwg.mxu0
    %s919 = scalar_lea.vmem %s6, 32
    %v920 = vld [vmem:[%s919] sm:$0xf]
    %v921 = vld [vmem:[%s919 + $0x4] sm:$0xf]
    %v922 = vld [vmem:[%s919 + $0x8] sm:$0xf]
    %v923 = vld [vmem:[%s919 + $0xc] sm:$0xf]
    %s924 = scalar_lea.vmem %s7, 2
    %v925 = vld [vmem:[%s924] sm:$0x1]
    %v927 = vperm.slane %v925, 0
    %v933 = vunpack.c.l.b16 %v920
    %v934 = vunpack.c.l.b16 %v921
    %v935 = vunpack.c.l.b16 %v922
    %v936 = vunpack.c.l.b16 %v923
    %v937 = vpack.c.b16 %v934, %v933
    %v938 = vpack.c.b16 %v936, %v935
    %941 = vmatpush.bf16.msra.mxu0 0
    %942 = vmatpush.bf16.msra.mxu0 0
    %943 = vmatpush.bf16.msra.mxu0 0
    %944 = vmatpush.bf16.msra.mxu0 0
    %945 = vmatpush.bf16.msra.mxu0 0
    %946 = vmatpush.bf16.msra.mxu0 0
    %947 = vmatpush.bf16.msra.mxu0 %v938
    %948 = vmatpush.bf16.msra.mxu0 %v937
    %949 = vmatmul.bf16.gmra.mxu0 %v903
    %v950 = vpop.f32.mrf.mxu0
    %v951 = vadd.f32 %v927, %v950
    %v952 = vpop.f32.mrf.mxu0
    %v953 = vadd.f32 %v927, %v952
    %954 = vdwg.mxu0
    %s955 = scalar_lea.vmem %s8, 32
    %v956 = vld [vmem:[%s955] sm:$0xf]
    %v957 = vld [vmem:[%s955 + $0x4] sm:$0xf]
    %v958 = vld [vmem:[%s955 + $0x8] sm:$0xf]
    %v959 = vld [vmem:[%s955 + $0xc] sm:$0xf]
    %s960 = scalar_lea.vmem %s9, 2
    %v961 = vld [vmem:[%s960] sm:$0x1]
    %v963 = vperm.slane %v961, 0
    %v969 = vunpack.c.l.b16 %v956
    %v970 = vunpack.c.l.b16 %v957
    %v971 = vunpack.c.l.b16 %v958
    %v972 = vunpack.c.l.b16 %v959
    %v973 = vpack.c.b16 %v970, %v969
    %v974 = vpack.c.b16 %v972, %v971
    %977 = vmatpush.bf16.msra.mxu0 0
    %978 = vmatpush.bf16.msra.mxu0 0
    %979 = vmatpush.bf16.msra.mxu0 0
    %980 = vmatpush.bf16.msra.mxu0 0
    %981 = vmatpush.bf16.msra.mxu0 0
    %982 = vmatpush.bf16.msra.mxu0 0
    %983 = vmatpush.bf16.msra.mxu0 %v974
    %984 = vmatpush.bf16.msra.mxu0 %v973
    %985 = vmatmul.bf16.gmra.mxu0 %v903
    %v986 = vpop.f32.mrf.mxu0
    %v987 = vadd.f32 %v963, %v986
    %v988 = vpop.f32.mrf.mxu0
    %v989 = vadd.f32 %v963, %v988
    %990 = vdwg.mxu0
    %v991 = vpack.c.bf16 %v915, %v915
    %v992 = vpack.c.bf16 %v917, %v917
    %v993 = vpack.c.bf16 %v951, %v951
    %v994 = vpack.c.bf16 %v953, %v953
    %v996 = vsel %vm260, %v991, 0
    %v999 = vsel %vm260, %v993, 0
    %1001 = vmatpush.bf16.xpose.msra.mxu0 0
    %1002 = vmatpush.bf16.xpose.msra.mxu0 0
    %1003 = vmatpush.bf16.xpose.msra.mxu0 0
    %1004 = vmatpush.bf16.xpose.msra.mxu0 0
    %1005 = vmatpush.bf16.xpose.msra.mxu0 0
    %1006 = vmatpush.bf16.xpose.msra.mxu0 0
    %1007 = vmatpush.bf16.xpose.msra.mxu0 0
    %1008 = vmatpush.bf16.xpose.msra.mxu0 %v999
    %1009 = vmatmul.bf16.gmra.mxu0 %v996
    %v1010 = vpop.f32.mrf.mxu0
    %v1011 = vadd.f32 0.0, %v1010
    %v1012 = vpop.f32.mrf.mxu0
    %1013 = vdwg.mxu0
    %v1015 = vsel %vm260, %v992, 0
    %v1018 = vsel %vm260, %v994, 0
    %1020 = vmatpush.bf16.xpose.msra.mxu0 0
    %1021 = vmatpush.bf16.xpose.msra.mxu0 0
    %1022 = vmatpush.bf16.xpose.msra.mxu0 0
    %1023 = vmatpush.bf16.xpose.msra.mxu0 0
    %1024 = vmatpush.bf16.xpose.msra.mxu0 0
    %1025 = vmatpush.bf16.xpose.msra.mxu0 0
    %1026 = vmatpush.bf16.xpose.msra.mxu0 0
    %1027 = vmatpush.bf16.xpose.msra.mxu0 %v1018
    %1028 = vmatmul.bf16.gmra.mxu0 %v1015
    %v1029 = vpop.f32.mrf.mxu0
    %v1030 = vadd.f32 0.0, %v1029
    %v1031 = vpop.f32.mrf.mxu0
    %1032 = vdwg.mxu0
    %v1033 = vmul.f32 %v1011, 0.25
    %v1034 = vmul.f32 %v1030, 0.25
    %v1035 = vadd.f32 %v1033, %v303
    %v1036 = vadd.f32 %v1034, %v304
    %v1037 = vsel %vm309, %v1035, -inf
    %1038 = vmax.xlane.f32.xlu0 %v1037
    %v1039 = vpop.xlane.xlu0 %1038
    %v1040 = vsel %vm309, %v1036, -inf
    %1041 = vmax.xlane.f32.xlu0 %v1040
    %v1042 = vpop.xlane.xlu0 %1041
    %v1043 = vsub.f32 %v1035, %v1039
    %v1044 = vsub.f32 %v1036, %v1042
    %v1045 = vmul.f32 %v1043, 1.442695
    %v1046 = vpow.pop %v1045
    %v1047 = vmul.f32 %v1044, 1.442695
    %v1048 = vpow.pop %v1047
    %v1049 = vsel %vm309, %v1046, 0.0
    %1050 = vadd.xlane.f32.xlu0 %v1049
    %v1051 = vpop.xlane.xlu0 %1050
    %v1052 = vsel %vm309, %v1048, 0.0
    %1053 = vadd.xlane.f32.xlu0 %v1052
    %v1054 = vpop.xlane.xlu0 %1053
    %v1055 = vrcp.pop %v1051
    %v1056 = vrcp.pop %v1054
    %v1057 = vmul.f32 %v1046, %v1055
    %v1058 = vmul.f32 %v1048, %v1056
    %v1059 = vpack.c.bf16 %v1057, %v1057
    %v1060 = vpack.c.bf16 %v1058, %v1058
    %v1061 = vpack.c.bf16 %v987, %v987
    %v1062 = vpack.c.bf16 %v989, %v989
    %v1064 = vsel %vm309, %v1059, 0
    %v1067 = vsel %vm339, %v1061, 0
    %1069 = vmatpush.bf16.msra.mxu0 0
    %1070 = vmatpush.bf16.msra.mxu0 0
    %1071 = vmatpush.bf16.msra.mxu0 0
    %1072 = vmatpush.bf16.msra.mxu0 0
    %1073 = vmatpush.bf16.msra.mxu0 0
    %1074 = vmatpush.bf16.msra.mxu0 0
    %1075 = vmatpush.bf16.msra.mxu0 0
    %1076 = vmatpush.bf16.msra.mxu0 %v1067
    %1077 = vmatmul.bf16.gmra.mxu0 %v1064
    %v1078 = vpop.f32.mrf.mxu0
    %v1079 = vadd.f32 0.0, %v1078
    %v1080 = vpop.f32.mrf.mxu0
    %1081 = vdwg.mxu0
    %v1083 = vsel %vm309, %v1060, 0
    %v1086 = vsel %vm339, %v1062, 0
    %1088 = vmatpush.bf16.msra.mxu0 0
    %1089 = vmatpush.bf16.msra.mxu0 0
    %1090 = vmatpush.bf16.msra.mxu0 0
    %1091 = vmatpush.bf16.msra.mxu0 0
    %1092 = vmatpush.bf16.msra.mxu0 0
    %1093 = vmatpush.bf16.msra.mxu0 0
    %1094 = vmatpush.bf16.msra.mxu0 0
    %1095 = vmatpush.bf16.msra.mxu0 %v1086
    %1096 = vmatmul.bf16.gmra.mxu0 %v1083
    %v1097 = vpop.f32.mrf.mxu0
    %v1098 = vadd.f32 0.0, %v1097
    %v1099 = vpop.f32.mrf.mxu0
    %1100 = vdwg.mxu0
    %v1101 = vpack.c.bf16 %v1098, %v1079
    %s1102 = scalar_lea.vmem %s10, 16
    %v1103 = vld [vmem:[%s1102] sm:$0xf]
    %v1104 = vld [vmem:[%s1102 + $0x4] sm:$0xf]
    %s1105 = scalar_lea.vmem %s4, 48
    %v1106 = vld [vmem:[%s1105] sm:$0xf]
    %v1107 = vld [vmem:[%s1105 + $0x4] sm:$0xf]
    %v1108 = vld [vmem:[%s1105 + $0x8] sm:$0xf]
    %v1109 = vld [vmem:[%s1105 + $0xc] sm:$0xf]
    %s1110 = scalar_lea.vmem %s5, 3
    %v1111 = vld [vmem:[%s1110] sm:$0x1]
    %v1113 = vperm.slane %v1111, 0
    %v1119 = vunpack.c.l.b16 %v1106
    %v1120 = vunpack.c.l.b16 %v1107
    %v1121 = vunpack.c.l.b16 %v1108
    %v1122 = vunpack.c.l.b16 %v1109
    %v1123 = vpack.c.b16 %v1120, %v1119
    %v1124 = vpack.c.b16 %v1122, %v1121
    %1127 = vmatpush.bf16.msra.mxu0 0
    %1128 = vmatpush.bf16.msra.mxu0 0
    %1129 = vmatpush.bf16.msra.mxu0 0
    %1130 = vmatpush.bf16.msra.mxu0 0
    %1131 = vmatpush.bf16.msra.mxu0 0
    %1132 = vmatpush.bf16.msra.mxu0 0
    %1133 = vmatpush.bf16.msra.mxu0 %v1124
    %1134 = vmatpush.bf16.msra.mxu0 %v1123
    %1135 = vmatmul.bf16.gmra.mxu0 %v903
    %v1136 = vpop.f32.mrf.mxu0
    %v1137 = vadd.f32 %v1113, %v1136
    %v1138 = vpop.f32.mrf.mxu0
    %v1139 = vadd.f32 %v1113, %v1138
    %1140 = vdwg.mxu0
    %s1141 = scalar_lea.vmem %s6, 48
    %v1142 = vld [vmem:[%s1141] sm:$0xf]
    %v1143 = vld [vmem:[%s1141 + $0x4] sm:$0xf]
    %v1144 = vld [vmem:[%s1141 + $0x8] sm:$0xf]
    %v1145 = vld [vmem:[%s1141 + $0xc] sm:$0xf]
    %s1146 = scalar_lea.vmem %s7, 3
    %v1147 = vld [vmem:[%s1146] sm:$0x1]
    %v1149 = vperm.slane %v1147, 0
    %v1155 = vunpack.c.l.b16 %v1142
    %v1156 = vunpack.c.l.b16 %v1143
    %v1157 = vunpack.c.l.b16 %v1144
    %v1158 = vunpack.c.l.b16 %v1145
    %v1159 = vpack.c.b16 %v1156, %v1155
    %v1160 = vpack.c.b16 %v1158, %v1157
    %1163 = vmatpush.bf16.msra.mxu0 0
    %1164 = vmatpush.bf16.msra.mxu0 0
    %1165 = vmatpush.bf16.msra.mxu0 0
    %1166 = vmatpush.bf16.msra.mxu0 0
    %1167 = vmatpush.bf16.msra.mxu0 0
    %1168 = vmatpush.bf16.msra.mxu0 0
    %1169 = vmatpush.bf16.msra.mxu0 %v1160
    %1170 = vmatpush.bf16.msra.mxu0 %v1159
    %1171 = vmatmul.bf16.gmra.mxu0 %v903
    %v1172 = vpop.f32.mrf.mxu0
    %v1173 = vadd.f32 %v1149, %v1172
    %v1174 = vpop.f32.mrf.mxu0
    %v1175 = vadd.f32 %v1149, %v1174
    %1176 = vdwg.mxu0
    %s1177 = scalar_lea.vmem %s8, 48
    %v1178 = vld [vmem:[%s1177] sm:$0xf]
    %v1179 = vld [vmem:[%s1177 + $0x4] sm:$0xf]
    %v1180 = vld [vmem:[%s1177 + $0x8] sm:$0xf]
    %v1181 = vld [vmem:[%s1177 + $0xc] sm:$0xf]
    %s1182 = scalar_lea.vmem %s9, 3
    %v1183 = vld [vmem:[%s1182] sm:$0x1]
    %v1185 = vperm.slane %v1183, 0
    %v1191 = vunpack.c.l.b16 %v1178
    %v1192 = vunpack.c.l.b16 %v1179
    %v1193 = vunpack.c.l.b16 %v1180
    %v1194 = vunpack.c.l.b16 %v1181
    %v1195 = vpack.c.b16 %v1192, %v1191
    %v1196 = vpack.c.b16 %v1194, %v1193
    %1199 = vmatpush.bf16.msra.mxu0 0
    %1200 = vmatpush.bf16.msra.mxu0 0
    %1201 = vmatpush.bf16.msra.mxu0 0
    %1202 = vmatpush.bf16.msra.mxu0 0
    %1203 = vmatpush.bf16.msra.mxu0 0
    %1204 = vmatpush.bf16.msra.mxu0 0
    %1205 = vmatpush.bf16.msra.mxu0 %v1196
    %1206 = vmatpush.bf16.msra.mxu0 %v1195
    %1207 = vmatmul.bf16.gmra.mxu0 %v903
    %v1208 = vpop.f32.mrf.mxu0
    %v1209 = vadd.f32 %v1185, %v1208
    %v1210 = vpop.f32.mrf.mxu0
    %v1211 = vadd.f32 %v1185, %v1210
    %1212 = vdwg.mxu0
    %v1213 = vpack.c.bf16 %v1137, %v1137
    %v1214 = vpack.c.bf16 %v1139, %v1139
    %v1215 = vpack.c.bf16 %v1173, %v1173
    %v1216 = vpack.c.bf16 %v1175, %v1175
    %v1218 = vsel %vm260, %v1213, 0
    %v1221 = vsel %vm260, %v1215, 0
    %1223 = vmatpush.bf16.xpose.msra.mxu0 0
    %1224 = vmatpush.bf16.xpose.msra.mxu0 0
    %1225 = vmatpush.bf16.xpose.msra.mxu0 0
    %1226 = vmatpush.bf16.xpose.msra.mxu0 0
    %1227 = vmatpush.bf16.xpose.msra.mxu0 0
    %1228 = vmatpush.bf16.xpose.msra.mxu0 0
    %1229 = vmatpush.bf16.xpose.msra.mxu0 0
    %1230 = vmatpush.bf16.xpose.msra.mxu0 %v1221
    %1231 = vmatmul.bf16.gmra.mxu0 %v1218
    %v1232 = vpop.f32.mrf.mxu0
    %v1233 = vadd.f32 0.0, %v1232
    %v1234 = vpop.f32.mrf.mxu0
    %1235 = vdwg.mxu0
    %v1237 = vsel %vm260, %v1214, 0
    %v1240 = vsel %vm260, %v1216, 0
    %1242 = vmatpush.bf16.xpose.msra.mxu0 0
    %1243 = vmatpush.bf16.xpose.msra.mxu0 0
    %1244 = vmatpush.bf16.xpose.msra.mxu0 0
    %1245 = vmatpush.bf16.xpose.msra.mxu0 0
    %1246 = vmatpush.bf16.xpose.msra.mxu0 0
    %1247 = vmatpush.bf16.xpose.msra.mxu0 0
    %1248 = vmatpush.bf16.xpose.msra.mxu0 0
    %1249 = vmatpush.bf16.xpose.msra.mxu0 %v1240
    %1250 = vmatmul.bf16.gmra.mxu0 %v1237
    %v1251 = vpop.f32.mrf.mxu0
    %v1252 = vadd.f32 0.0, %v1251
    %v1253 = vpop.f32.mrf.mxu0
    %1254 = vdwg.mxu0
    %v1255 = vmul.f32 %v1233, 0.25
    %v1256 = vmul.f32 %v1252, 0.25
    %v1257 = vadd.f32 %v1255, %v303
    %v1258 = vadd.f32 %v1256, %v304
    %v1259 = vsel %vm309, %v1257, -inf
    %1260 = vmax.xlane.f32.xlu0 %v1259
    %v1261 = vpop.xlane.xlu0 %1260
    %v1262 = vsel %vm309, %v1258, -inf
    %1263 = vmax.xlane.f32.xlu0 %v1262
    %v1264 = vpop.xlane.xlu0 %1263
    %v1265 = vsub.f32 %v1257, %v1261
    %v1266 = vsub.f32 %v1258, %v1264
    %v1267 = vmul.f32 %v1265, 1.442695
    %v1268 = vpow.pop %v1267
    %v1269 = vmul.f32 %v1266, 1.442695
    %v1270 = vpow.pop %v1269
    %v1271 = vsel %vm309, %v1268, 0.0
    %1272 = vadd.xlane.f32.xlu0 %v1271
    %v1273 = vpop.xlane.xlu0 %1272
    %v1274 = vsel %vm309, %v1270, 0.0
    %1275 = vadd.xlane.f32.xlu0 %v1274
    %v1276 = vpop.xlane.xlu0 %1275
    %v1277 = vrcp.pop %v1273
    %v1278 = vrcp.pop %v1276
    %v1279 = vmul.f32 %v1268, %v1277
    %v1280 = vmul.f32 %v1270, %v1278
    %v1281 = vpack.c.bf16 %v1279, %v1279
    %v1282 = vpack.c.bf16 %v1280, %v1280
    %v1283 = vpack.c.bf16 %v1209, %v1209
    %v1284 = vpack.c.bf16 %v1211, %v1211
    %v1286 = vsel %vm309, %v1281, 0
    %v1289 = vsel %vm339, %v1283, 0
    %1291 = vmatpush.bf16.msra.mxu0 0
    %1292 = vmatpush.bf16.msra.mxu0 0
    %1293 = vmatpush.bf16.msra.mxu0 0
    %1294 = vmatpush.bf16.msra.mxu0 0
    %1295 = vmatpush.bf16.msra.mxu0 0
    %1296 = vmatpush.bf16.msra.mxu0 0
    %1297 = vmatpush.bf16.msra.mxu0 0
    %1298 = vmatpush.bf16.msra.mxu0 %v1289
    %1299 = vmatmul.bf16.gmra.mxu0 %v1286
    %v1300 = vpop.f32.mrf.mxu0
    %v1301 = vadd.f32 0.0, %v1300
    %v1302 = vpop.f32.mrf.mxu0
    %1303 = vdwg.mxu0
    %v1305 = vsel %vm309, %v1282, 0
    %v1308 = vsel %vm339, %v1284, 0
    %1310 = vmatpush.bf16.msra.mxu0 0
    %1311 = vmatpush.bf16.msra.mxu0 0
    %1312 = vmatpush.bf16.msra.mxu0 0
    %1313 = vmatpush.bf16.msra.mxu0 0
    %1314 = vmatpush.bf16.msra.mxu0 0
    %1315 = vmatpush.bf16.msra.mxu0 0
    %1316 = vmatpush.bf16.msra.mxu0 0
    %1317 = vmatpush.bf16.msra.mxu0 %v1308
    %1318 = vmatmul.bf16.gmra.mxu0 %v1305
    %v1319 = vpop.f32.mrf.mxu0
    %v1320 = vadd.f32 0.0, %v1319
    %v1321 = vpop.f32.mrf.mxu0
    %1322 = vdwg.mxu0
    %v1323 = vpack.c.bf16 %v1320, %v1301
    %s1324 = scalar_lea.vmem %s10, 24
    %v1325 = vld [vmem:[%s1324] sm:$0xf]
    %v1326 = vld [vmem:[%s1324 + $0x4] sm:$0xf]
    %v1329 = vunpack.c.l.b16 %v1325
    %v1330 = vunpack.c.l.b16 %v1326
    %v1331 = vpack.c.b16 %v1330, %v1329
    %v1334 = vsel %vm260, %v1323, 0
    %1336 = vmatpush.bf16.msra.mxu0 0
    %1337 = vmatpush.bf16.msra.mxu0 0
    %1338 = vmatpush.bf16.msra.mxu0 0
    %1339 = vmatpush.bf16.msra.mxu0 0
    %1340 = vmatpush.bf16.msra.mxu0 0
    %1341 = vmatpush.bf16.msra.mxu0 0
    %1342 = vmatpush.bf16.msra.mxu0 0
    %1343 = vmatpush.bf16.msra.mxu0 %v1331
    %1344 = vmatmul.bf16.gmra.mxu0 %v1334
    %v1345 = vpop.f32.mrf.mxu0
    %v1346 = vadd.f32 0.0, %v1345
    %v1347 = vpop.f32.mrf.mxu0
    %v1348 = vadd.f32 0.0, %v1347
    %1349 = vdwg.mxu0
    %v1352 = vunpack.c.l.b16 %v1103
    %v1353 = vunpack.c.l.b16 %v1104
    %v1354 = vpack.c.b16 %v1353, %v1352
    %v1357 = vsel %vm260, %v1101, 0
    %1359 = vmatpush.bf16.msra.mxu0 0
    %1360 = vmatpush.bf16.msra.mxu0 0
    %1361 = vmatpush.bf16.msra.mxu0 0
    %1362 = vmatpush.bf16.msra.mxu0 0
    %1363 = vmatpush.bf16.msra.mxu0 0
    %1364 = vmatpush.bf16.msra.mxu0 0
    %1365 = vmatpush.bf16.msra.mxu0 0
    %1366 = vmatpush.bf16.msra.mxu0 %v1354
    %1367 = vmatmul.bf16.gmra.mxu0 %v1357
    %v1368 = vpop.f32.mrf.mxu0
    %v1369 = vadd.f32 %v1346, %v1368
    %v1370 = vpop.f32.mrf.mxu0
    %v1371 = vadd.f32 %v1348, %v1370
    %1372 = vdwg.mxu0
    %s1373 = scalar_lea.vmem %s11, 1
    %v1374 = vld [vmem:[%s1373] sm:$0x1]
    %v1376 = vperm.slane %v1374, 0
    %v1378 = vadd.f32 %v1369, %v1376
    %v1379 = vadd.f32 %v1371, %v1376
    %v1380 = vadd.f32 %v877, %v1378
    %v1381 = vadd.f32 %v878, %v1379
    %s1382 = scalar_lea.vmem %s12, 1
    %v1383 = vld [vmem:[%s1382] sm:$0x1]
    %s1384 = scalar_lea.vmem %s13, 1
    %v1385 = vld [vmem:[%s1384] sm:$0x1]
    %v1386 = vsel %vm86, %v1380, 0.0
    %1387 = vadd.xlane.f32.xlu0 %v1386
    %v1388 = vpop.xlane.xlu0 %1387
    %v1389 = vsel %vm86, %v1381, 0.0
    %1390 = vadd.xlane.f32.xlu0 %v1389
    %v1391 = vpop.xlane.xlu0 %1390
    %v1392 = vmul.f32 %v1388, %v99
    %v1393 = vmul.f32 %v1391, %v99
    %v1394 = vsub.f32 %v1380, %v1392
    %v1395 = vsub.f32 %v1381, %v1393
    %v1396 = vmul.f32 %v1394, %v1394
    %v1397 = vmul.f32 %v1395, %v1395
    %v1398 = vsel %vm86, %v1396, 0.0
    %1399 = vadd.xlane.f32.xlu0 %v1398
    %v1400 = vpop.xlane.xlu0 %1399
    %v1401 = vsel %vm86, %v1397, 0.0
    %1402 = vadd.xlane.f32.xlu0 %v1401
    %v1403 = vpop.xlane.xlu0 %1402
    %v1404 = vmul.f32 %v1400, %v99
    %v1405 = vmul.f32 %v1403, %v99
    %v1406 = vadd.f32 %v1404, 1e-12
    %v1407 = vadd.f32 %v1405, 1e-12
    %v1408 = vrsqrt.pop %v1406
    %v1409 = vmul.f32 %v1408, %v1406
    %v1410 = vmul.f32 %v1409, %v1408
    %v1411 = vmul.f32 0.5, %v1410
    %v1412 = vsub.f32 1.5, %v1411
    %v1413 = vmul.f32 %v1408, %v1412
    %vm1414 = vweird.f32 %v1406
    %vm1415 = vweird.f32 %v1408
    %vm1416 = vmor %vm1414, %vm1415
    %v1417 = vsel %vm1416, %v1408, %v1413
    %v1418 = vrsqrt.pop %v1407
    %v1419 = vmul.f32 %v1418, %v1407
    %v1420 = vmul.f32 %v1419, %v1418
    %v1421 = vmul.f32 0.5, %v1420
    %v1422 = vsub.f32 1.5, %v1421
    %v1423 = vmul.f32 %v1418, %v1422
    %vm1424 = vweird.f32 %v1407
    %vm1425 = vweird.f32 %v1418
    %vm1426 = vmor %vm1424, %vm1425
    %v1427 = vsel %vm1426, %v1418, %v1423
    %v1428 = vmul.f32 %v1394, %v1417
    %v1429 = vmul.f32 %v1395, %v1427
    %v1431 = vperm.slane %v1383, 0
    %v1433 = vmul.f32 %v1428, %v1431
    %v1434 = vmul.f32 %v1429, %v1431
    %v1436 = vperm.slane %v1385, 0
    %v1438 = vadd.f32 %v1433, %v1436
    %v1439 = vadd.f32 %v1434, %v1436
    %v1440 = vpack.c.bf16 %v1439, %v1438
    %s1441 = scalar_lea.vmem %s14, 16
    %v1442 = vld [vmem:[%s1441] sm:$0xf]
    %v1443 = vld [vmem:[%s1441 + $0x4] sm:$0xf]
    %v1444 = vld [vmem:[%s1441 + $0x8] sm:$0xf]
    %v1445 = vld [vmem:[%s1441 + $0xc] sm:$0xf]
    %s1446 = scalar_lea.vmem %s15, 1
    %v1447 = vld [vmem:[%s1446] sm:$0x1]
    %v1449 = vperm.slane %v1447, 0
    %v1455 = vunpack.c.l.b16 %v1442
    %v1456 = vunpack.c.l.b16 %v1443
    %v1457 = vunpack.c.l.b16 %v1444
    %v1458 = vunpack.c.l.b16 %v1445
    %v1459 = vpack.c.b16 %v1456, %v1455
    %v1460 = vpack.c.b16 %v1458, %v1457
    %v1464 = vsel %vm86, %v1440, 0
    %1466 = vmatpush.bf16.msra.mxu0 0
    %1467 = vmatpush.bf16.msra.mxu0 0
    %1468 = vmatpush.bf16.msra.mxu0 0
    %1469 = vmatpush.bf16.msra.mxu0 0
    %1470 = vmatpush.bf16.msra.mxu0 0
    %1471 = vmatpush.bf16.msra.mxu0 0
    %1472 = vmatpush.bf16.msra.mxu0 %v1460
    %1473 = vmatpush.bf16.msra.mxu0 %v1459
    %1474 = vmatmul.bf16.gmra.mxu0 %v1464
    %v1475 = vpop.f32.mrf.mxu0
    %v1476 = vadd.f32 %v1449, %v1475
    %v1477 = vpop.f32.mrf.mxu0
    %v1478 = vadd.f32 %v1449, %v1477
    %1479 = vdwg.mxu0
    %v1480 = vmul.f32 %v1476, %v1476
    %v1481 = vmul.f32 %v1478, %v1478
    %v1482 = vmul.f32 %v1476, %v1480
    %v1483 = vmul.f32 %v1478, %v1481
    %v1484 = vmul.f32 %v1482, 0.044715
    %v1485 = vmul.f32 %v1483, 0.044715
    %v1486 = vadd.f32 %v1476, %v1484
    %v1487 = vadd.f32 %v1478, %v1485
    %v1488 = vmul.f32 %v1486, 0.7978846
    %v1489 = vmul.f32 %v1487, 0.7978846
    %v1490 = vtanh.pop %v1488
    %v1491 = vtanh.pop %v1489
    %v1492 = vadd.f32 %v1490, 1.0
    %v1493 = vadd.f32 %v1491, 1.0
    %v1494 = vmul.f32 %v1492, 0.5
    %v1495 = vmul.f32 %v1493, 0.5
    %v1496 = vmul.f32 %v1476, %v1494
    %v1497 = vmul.f32 %v1478, %v1495
    %v1498 = vpack.c.bf16 %v1497, %v1496
    %s1499 = scalar_lea.vmem %s16, 32
    %v1500 = vld [vmem:[%s1499] sm:$0xf]
    %v1501 = vld [vmem:[%s1499 + $0x4] sm:$0xf]
    %v1502 = vld [vmem:[%s1499 + $0x8] sm:$0xf]
    %v1503 = vld [vmem:[%s1499 + $0xc] sm:$0xf]
    %v1504 = vld [vmem:[%s1499 + $0x10] sm:$0xf]
    %v1505 = vld [vmem:[%s1499 + $0x14] sm:$0xf]
    %v1506 = vld [vmem:[%s1499 + $0x18] sm:$0xf]
    %v1507 = vld [vmem:[%s1499 + $0x1c] sm:$0xf]
    %s1508 = scalar_lea.vmem %s17, 1
    %v1509 = vld [vmem:[%s1508] sm:$0x1]
    %v1511 = vperm.slane %v1509, 0
    %v1521 = vunpack.c.l.b16 %v1500
    %v1522 = vunpack.c.l.b16 %v1501
    %v1523 = vunpack.c.l.b16 %v1502
    %v1524 = vunpack.c.l.b16 %v1503
    %v1525 = vunpack.c.l.b16 %v1504
    %v1526 = vunpack.c.l.b16 %v1505
    %v1527 = vunpack.c.l.b16 %v1506
    %v1528 = vunpack.c.l.b16 %v1507
    %v1529 = vpack.c.b16 %v1522, %v1521
    %v1530 = vpack.c.b16 %v1524, %v1523
    %v1531 = vpack.c.b16 %v1526, %v1525
    %v1532 = vpack.c.b16 %v1528, %v1527
    %v1538 = vsel %vm803, %v1498, 0
    %1540 = vmatpush.bf16.msra.mxu0 0
    %1541 = vmatpush.bf16.msra.mxu0 0
    %1542 = vmatpush.bf16.msra.mxu0 0
    %1543 = vmatpush.bf16.msra.mxu0 0
    %1544 = vmatpush.bf16.msra.mxu0 %v1532
    %1545 = vmatpush.bf16.msra.mxu0 %v1531
    %1546 = vmatpush.bf16.msra.mxu0 %v1530
    %1547 = vmatpush.bf16.msra.mxu0 %v1529
    %1548 = vmatmul.bf16.gmra.mxu0 %v1538
    %v1549 = vpop.f32.mrf.mxu0
    %v1550 = vadd.f32 %v1511, %v1549
    %v1551 = vpop.f32.mrf.mxu0
    %v1552 = vadd.f32 %v1511, %v1551
    %1553 = vdwg.mxu0
    %v1554 = vadd.f32 %v1438, %v1550
    %v1555 = vadd.f32 %v1439, %v1552
    %s1556 = scalar_lea.vmem %s18, 1
    %v1557 = vld [vmem:[%s1556] sm:$0x1]
    %s1558 = scalar_lea.vmem %s19, 1
    %v1559 = vld [vmem:[%s1558] sm:$0x1]
    %v1560 = vsel %vm86, %v1554, 0.0
    %1561 = vadd.xlane.f32.xlu0 %v1560
    %v1562 = vpop.xlane.xlu0 %1561
    %v1563 = vsel %vm86, %v1555, 0.0
    %1564 = vadd.xlane.f32.xlu0 %v1563
    %v1565 = vpop.xlane.xlu0 %1564
    %v1566 = vmul.f32 %v1562, %v99
    %v1567 = vmul.f32 %v1565, %v99
    %v1568 = vsub.f32 %v1554, %v1566
    %v1569 = vsub.f32 %v1555, %v1567
    %v1570 = vmul.f32 %v1568, %v1568
    %v1571 = vmul.f32 %v1569, %v1569
    %v1572 = vsel %vm86, %v1570, 0.0
    %1573 = vadd.xlane.f32.xlu0 %v1572
    %v1574 = vpop.xlane.xlu0 %1573
    %v1575 = vsel %vm86, %v1571, 0.0
    %1576 = vadd.xlane.f32.xlu0 %v1575
    %v1577 = vpop.xlane.xlu0 %1576
    %v1578 = vmul.f32 %v1574, %v99
    %v1579 = vmul.f32 %v1577, %v99
    %v1580 = vadd.f32 %v1578, 1e-12
    %v1581 = vadd.f32 %v1579, 1e-12
    %v1582 = vrsqrt.pop %v1580
    %v1583 = vmul.f32 %v1582, %v1580
    %v1584 = vmul.f32 %v1583, %v1582
    %v1585 = vmul.f32 0.5, %v1584
    %v1586 = vsub.f32 1.5, %v1585
    %v1587 = vmul.f32 %v1582, %v1586
    %vm1588 = vweird.f32 %v1580
    %vm1589 = vweird.f32 %v1582
    %vm1590 = vmor %vm1588, %vm1589
    %v1591 = vsel %vm1590, %v1582, %v1587
    %v1592 = vrsqrt.pop %v1581
    %v1593 = vmul.f32 %v1592, %v1581
    %v1594 = vmul.f32 %v1593, %v1592
    %v1595 = vmul.f32 0.5, %v1594
    %v1596 = vsub.f32 1.5, %v1595
    %v1597 = vmul.f32 %v1592, %v1596
    %vm1598 = vweird.f32 %v1581
    %vm1599 = vweird.f32 %v1592
    %vm1600 = vmor %vm1598, %vm1599
    %v1601 = vsel %vm1600, %v1592, %v1597
    %v1602 = vmul.f32 %v1568, %v1591
    %v1603 = vmul.f32 %v1569, %v1601
    %v1605 = vperm.slane %v1557, 0
    %v1607 = vmul.f32 %v1602, %v1605
    %v1608 = vmul.f32 %v1603, %v1605
    %v1610 = vperm.slane %v1559, 0
    %v1612 = vadd.f32 %v1607, %v1610
    %v1613 = vadd.f32 %v1608, %v1610
    %v1614 = vpack.c.bf16 %v1612, %v1612
    %v1615 = vpack.c.bf16 %v1613, %v1613
    %v1616 = vld [vmem:[%s20] sm:$0xf]
    %v1617 = vld [vmem:[%s20 + $0x4] sm:$0xf]
    %v1618 = vld [vmem:[%s20 + $0x8] sm:$0xf]
    %v1619 = vld [vmem:[%s20 + $0xc] sm:$0xf]
    %v1620 = vld [vmem:[%s21] sm:$0x1]
    %v1622 = vperm.slane %v1620, 0
    %v1626 = vunpack.c.l.b16 %v1614
    %v1627 = vunpack.c.l.b16 %v1615
    %v1628 = vrot.slane %v1627, 7
    %vm1629 = vcmask 1041409
    %v1630 = vsel %vm1629, %v1628, %v1626
    %v1631 = vpack.c.b16 %v1630, %v1630
    %v1636 = vunpack.c.l.b16 %v1616
    %v1637 = vunpack.c.l.b16 %v1617
    %v1638 = vunpack.c.l.b16 %v1618
    %v1639 = vunpack.c.l.b16 %v1619
    %v1640 = vpack.c.b16 %v1637, %v1636
    %v1641 = vpack.c.b16 %v1639, %v1638
    %v1645 = vsel %vm86, %v1631, 0
    %1647 = vmatpush.bf16.msra.mxu0 0
    %1648 = vmatpush.bf16.msra.mxu0 0
    %1649 = vmatpush.bf16.msra.mxu0 0
    %1650 = vmatpush.bf16.msra.mxu0 0
    %1651 = vmatpush.bf16.msra.mxu0 0
    %1652 = vmatpush.bf16.msra.mxu0 0
    %1653 = vmatpush.bf16.msra.mxu0 %v1641
    %1654 = vmatpush.bf16.msra.mxu0 %v1640
    %1655 = vmatmul.bf16.gmra.mxu0 %v1645
    %v1656 = vpop.f32.mrf.mxu0
    %v1657 = vadd.f32 %v1622, %v1656
    %v1658 = vpop.f32.mrf.mxu0
    %1659 = vdwg.mxu0
    %v1660 = vtanh.pop %v1657
    %vm1661 = vcmask 254976
    %1662 = vst.msk [vmem:[#allocation2] sm:$0x3] %vm1661, %v1660
    %v1663 = vpack.c.bf16 %v1660, %v1660
    %v1664 = vld [vmem:[%s22] sm:$0xf]
    %v1665 = vld [vmem:[%s22 + $0x4] sm:$0xf]
    %v1666 = vld [vmem:[%s22 + $0x8] sm:$0xf]
    %v1667 = vld [vmem:[%s22 + $0xc] sm:$0xf]
    %v1668 = vld [vmem:[%s23] sm:$0x1]
    %v1670 = vperm.slane %v1668, 0
    %v1676 = vunpack.c.l.b16 %v1664
    %v1677 = vunpack.c.l.b16 %v1665
    %v1678 = vunpack.c.l.b16 %v1666
    %v1679 = vunpack.c.l.b16 %v1667
    %v1680 = vpack.c.b16 %v1677, %v1676
    %v1681 = vpack.c.b16 %v1679, %v1678
    %v1685 = vsel %vm86, %v1663, 0
    %1687 = vmatpush.bf16.msra.mxu0 0
    %1688 = vmatpush.bf16.msra.mxu0 0
    %1689 = vmatpush.bf16.msra.mxu0 0
    %1690 = vmatpush.bf16.msra.mxu0 0
    %1691 = vmatpush.bf16.msra.mxu0 0
    %1692 = vmatpush.bf16.msra.mxu0 0
    %1693 = vmatpush.bf16.msra.mxu0 %v1681
    %1694 = vmatpush.bf16.msra.mxu0 %v1680
    %1695 = vmatmul.bf16.gmra.mxu0 %v1685
    %v1696 = vpop.f32.mrf.mxu0
    %v1697 = vadd.f32 %v1670, %v1696
    %v1698 = vpop.f32.mrf.mxu0
    %1699 = vdwg.mxu0
    %1700 = vst [vmem:[#allocation4] sm:$0x3] %v1697
    // Predicated region
    $region98: #{_sentiment_with_pooled.1} parent=1 // pred_check
      _
    $region99: #{_sentiment_with_pooled.1} parent=1 // pred_check_branch
      %1702 = sbr.rel (0) target = $region101
    $region100: #{_sentiment_with_pooled.1} parent=1 // pred_region
      %1704 = vsyncadd [#allocation3], 0
      %s1706 = sshll.u32 [#allocation2], 4
      %s1707 = int_to_ptr.vmem [resolvable:$true] %s1706
      %s1708 = sshll.u32 %s24, 4
      %s1709 = int_to_ptr.hbm [resolvable:$true] %s1708
      %1711 = dma.vmem_to_hbm [thread:$0]  %s1707, 32, %s1709, [#allocation3]
    $region101: #{_sentiment_with_pooled.1} parent=1 // pred_fallthru
      _
    // Predicated region
    $region102: #{_sentiment_with_pooled.1} parent=1 // pred_check
      _
    $region103: #{_sentiment_with_pooled.1} parent=1 // pred_check_branch
      %1713 = sbr.rel (0) target = $region105
    $region104: #{_sentiment_with_pooled.1} parent=1 // pred_region
      %1715 = vsyncadd [#allocation5], 0
      %s1717 = sshll.u32 [#allocation4], 4
      %s1718 = int_to_ptr.vmem [resolvable:$true] %s1717
      %s1719 = sshll.u32 %s25, 4
      %s1720 = int_to_ptr.hbm [resolvable:$true] %s1719
      %1722 = dma.vmem_to_hbm [thread:$0]  %s1718, 32, %s1720, [#allocation5]
    $region105: #{_sentiment_with_pooled.1} parent=1 // pred_fallthru
      _
    // Predicated region
    $region106: #{_sentiment_with_pooled.1} parent=1 // pred_check
      _
    $region107: #{_sentiment_with_pooled.1} parent=1 // pred_check_branch
      %1724 = sbr.rel (0) target = $region109
    $region108: #{_sentiment_with_pooled.1} parent=1 // pred_region
      %1726 = dma.done [#allocation3], 32
    $region109: #{_sentiment_with_pooled.1} parent=1 // pred_fallthru
      _
    // Predicated region
    $region110: #{_sentiment_with_pooled.1} parent=1 // pred_check
      _
    $region111: #{_sentiment_with_pooled.1} parent=1 // pred_check_branch
      %1728 = sbr.rel (0) target = $region113
    $region112: #{_sentiment_with_pooled.1} parent=1 // pred_region
      %1730 = dma.done [#allocation5], 32
    $region113: #{_sentiment_with_pooled.1} parent=1 // pred_fallthru
      _
    %1731 = vsyncpa [#allocation3], 1
    %1732 = vsyncpa [#allocation5], 1

</llo_original>
